<compile_context>
chip_gen: v7x
topology: tpu7x:2x2x1
jax: 0.10.0
libtpu: 0.0.40
codegen_flags: <defaults>
</compile_context>

<pallas_src>
import numpy as np
import jax
import jax.numpy as jnp
from jax.experimental import pallas as pl
from jax.experimental.pallas import tpu as pltpu


# ----------------------------- shared helpers --------------------------------
def _softplus(x):
    # numerically-stable softplus (matches F.softplus for the value ranges here)
    return jnp.maximum(x, 0.0) + jnp.log1p(jnp.exp(-jnp.abs(x)))


# kernel-side helpers (use approximate EUP reciprocal)
def _sigmoid_k(x):
    return pl.reciprocal(1.0 + jnp.exp(-x), approx=True)


def _softmax_k(x):
    m = jnp.max(x, axis=-1, keepdims=True)
    e = jnp.exp(x - m)
    return e * pl.reciprocal(jnp.sum(e, axis=-1, keepdims=True), approx=True)


# reference-side helpers (exact math)
def _sigmoid_ref(x):
    return 1.0 / (1.0 + jnp.exp(-x))


def _softmax_ref(x):
    m = jnp.max(x, axis=-1, keepdims=True)
    e = jnp.exp(x - m)
    return e / jnp.sum(e, axis=-1, keepdims=True)


# ----------------------------- the Pallas kernel ------------------------------
def ntm_kernel(xh1_ref, c0_ref, w_lstm_ref, mem_ref, wprev_ref,
               w_heads_ref, b_heads_ref, w_fc_r_ref,
               state_ref, mem_out_ref):
    B, N, M = mem_ref.shape
    H = c0_ref.shape[1]
    O = w_fc_r_ref.shape[1]

    # ---- LSTM controller cell (1 layer, single step); bias folded into w_lstm.
    #      PyTorch gate order: i, f, g, o.
    gates = jnp.dot(xh1_ref[...], w_lstm_ref[...], preferred_element_type=jnp.float32)
    i_g = _sigmoid_k(gates[:, 0:H])
    f_g = _sigmoid_k(gates[:, H:2 * H])
    g_g = jnp.tanh(gates[:, 2 * H:3 * H])
    o_g = _sigmoid_k(gates[:, 3 * H:4 * H])
    c_new = f_g * c0_ref[...] + i_g * g_g
    h_new = o_g * jnp.tanh(c_new)

    mem = mem_ref[...]  # (B, N, M)

    # circular-shift permutation matrices built in-register (no modulo, no inputs)
    row = jax.lax.broadcasted_iota(jnp.int32, (N, N), 0)
    col = jax.lax.broadcasted_iota(jnp.int32, (N, N), 1)
    # (wg @ p_m1)[:, j] == wg[:, (j-1) % N] ; (wg @ p_p1)[:, j] == wg[:, (j+1) % N]
    p_m1 = ((col == row + 1) | ((row == N - 1) & (col == 0))).astype(jnp.float32)
    p_p1 = ((col == row - 1) | ((row == 0) & (col == N - 1))).astype(jnp.float32)

    def address(k, beta, g, s, gamma, w_prev):
        # cosine similarity of key vs each memory row
        dot = jnp.sum(k[:, None, :] * mem, axis=2)                        # (B, N)
        knorm = jnp.sqrt(jnp.sum(k * k, axis=1, keepdims=True))           # (B, 1)
        mnorm = jnp.sqrt(jnp.sum(mem * mem, axis=2))                      # (B, N)
        cos = dot * pl.reciprocal(
            jnp.maximum(knorm, 1e-8) * jnp.maximum(mnorm, 1e-8), approx=True)
        wc = _softmax_k(beta * cos)                                       # (B, N)
        wg = g * wc + (1.0 - g) * w_prev
        # circular convolution with 3-tap shift kernel, via permutation matmuls
        wg_m1 = jnp.dot(wg, p_m1, preferred_element_type=jnp.float32)
        wg_p1 = jnp.dot(wg, p_p1, preferred_element_type=jnp.float32)
        ws = s[:, 0:1] * wg_m1 + s[:, 1:2] * wg + s[:, 2:3] * wg_p1
        ws = jnp.power(ws, gamma)                                         # sharpen
        return ws * pl.reciprocal(jnp.sum(ws, axis=1, keepdims=True) + 1e-16,
                                  approx=True)

    # ---- fused head / fc(h) projection: ONE MXU push, then static lane slices
    out_h = (jnp.dot(h_new, w_heads_ref[...], preferred_element_type=jnp.float32)
             + b_heads_ref[...])
    # read head columns [0, M+6)
    k_r = jnp.tanh(out_h[:, 0:M])
    beta_r = _softplus(out_h[:, M:M + 1])
    g_r = _sigmoid_k(out_h[:, M + 1:M + 2])
    s_r = _softmax_k(out_h[:, M + 2:M + 5])
    gamma_r = 1.0 + _softplus(out_h[:, M + 5:M + 6])
    # write head columns [M+6, 4M+12)
    wo = M + 6
    k_w = jnp.tanh(out_h[:, wo:wo + M])
    beta_w = _softplus(out_h[:, wo + M:wo + M + 1])
    g_w = _sigmoid_k(out_h[:, wo + M + 1:wo + M + 2])
    s_w = _softmax_k(out_h[:, wo + M + 2:wo + M + 5])
    gamma_w = 1.0 + _softplus(out_h[:, wo + M + 5:wo + M + 6])
    a_vec = jnp.tanh(out_h[:, wo + M + 6:wo + 2 * M + 6])
    e_vec = _sigmoid_k(out_h[:, wo + 2 * M + 6:wo + 3 * M + 6])
    # fc(h) part columns [4M+12, 4M+12+O), fc bias already folded in
    fo = wo + 3 * M + 6
    o_hpart = out_h[:, fo:fo + O]

    wprev = wprev_ref[...]                                                # (B, 2N)

    # ---- Read head
    w_r = address(k_r, beta_r, g_r, s_r, gamma_r, wprev[:, 0:N])
    r = jnp.sum(w_r[:, :, None] * mem, axis=1)                            # (B, M)

    # ---- Write head (addresses the pre-write memory, then erase/add update)
    w_w = address(k_w, beta_w, g_w, s_w, gamma_w, wprev[:, N:2 * N])
    erase = w_w[:, :, None] * e_vec[:, None, :]
    add = w_w[:, :, None] * a_vec[:, None, :]
    mem_out_ref[...] = mem * (1.0 - erase) + add

    # ---- Output: sigmoid(fc([controller_out, read])) — h-part already computed
    o = _sigmoid_k(o_hpart + jnp.dot(r, w_fc_r_ref[...],
                                     preferred_element_type=jnp.float32))

    # ---- single lane-packed state output: [o | r | h | c | w_r | w_w | pad]
    state_ref[:, 0:O] = o
    state_ref[:, O:O + M] = r
    state_ref[:, O + M:O + M + H] = h_new
    state_ref[:, O + M + H:O + M + 2 * H] = c_new
    state_ref[:, O + M + 2 * H:O + M + 2 * H + N] = w_r
    state_ref[:, O + M + 2 * H + N:O + M + 2 * H + 2 * N] = w_w
    used = O + M + 2 * H + 2 * N
    pad = state_ref.shape[1] - used
    if pad > 0:
        state_ref[:, used:] = jnp.zeros((B, pad), jnp.float32)


# ----------------------------- wrapper ---------------------------------------
def ntm_forward_pallas(x, init_r, h0, c0, w_ih, w_hh, b_lstm, mem,
                       wprev_r, wprev_w, w_read, b_read, w_write, b_write,
                       w_fc, b_fc):
    B, N, M = mem.shape
    H = h0.shape[1]
    O = w_fc.shape[1]

    # --- one-time operand packing (parameter prep; cacheable in a real model) ---
    ones = jnp.ones((B, 1), jnp.float32)
    xh1 = jnp.concatenate([x, init_r, h0, ones], axis=1)            # (B, In+H+1)
    w_lstm = jnp.concatenate([w_ih, w_hh, b_lstm], axis=0)          # (In+H+1, 4H)
    w_heads = jnp.concatenate([w_read, w_write, w_fc[:H, :]], axis=1)  # (H, 4M+12+O)
    b_heads = jnp.concatenate([b_read, b_write, b_fc], axis=1)      # (1, 4M+12+O)
    w_fc_r = w_fc[H:, :]                                            # (M, O)
    wprev = jnp.concatenate([wprev_r, wprev_w], axis=1)             # (B, 2N)

    state_w = O + M + 2 * H + 2 * N
    state_w_pad = ((state_w + 127) // 128) * 128                    # lane-dense output

    vmem = pl.BlockSpec(memory_space=pltpu.MemorySpace.VMEM)
    out_shape = (
        jax.ShapeDtypeStruct((B, state_w_pad), jnp.float32),        # packed state
        jax.ShapeDtypeStruct((B, N, M), jnp.float32),               # new memory
    )
    packed, mem_new = pl.pallas_call(
        ntm_kernel,
        out_shape=out_shape,
        in_specs=[vmem] * 8,
        out_specs=(vmem, vmem),
    )(xh1, c0, w_lstm, mem, wprev, w_heads, b_heads, w_fc_r)

    o = packed[:, 0:O]
    r = packed[:, O:O + M]
    h = packed[:, O + M:O + M + H]
    c = packed[:, O + M + H:O + M + 2 * H]
    w_r = packed[:, O + M + 2 * H:O + M + 2 * H + N]
    w_w = packed[:, O + M + 2 * H + N:O + M + 2 * H + 2 * N]
    return o, r, h, c, w_r, w_w, mem_new


# ----------------------------- pure-JAX reference (exact math) ----------------
def ntm_forward_ref(x, init_r, h0, c0, w_ih, w_hh, b_lstm, mem,
                    wprev_r, wprev_w, w_read, b_read, w_write, b_write,
                    w_fc, b_fc):
    H = h0.shape[1]
    M = mem.shape[2]
    inp = jnp.concatenate([x, init_r], axis=1)
    gates = inp @ w_ih + h0 @ w_hh + b_lstm
    i_g = _sigmoid_ref(gates[:, 0:H]); f_g = _sigmoid_ref(gates[:, H:2 * H])
    g_g = jnp.tanh(gates[:, 2 * H:3 * H]); o_g = _sigmoid_ref(gates[:, 3 * H:4 * H])
    c = f_g * c0 + i_g * g_g
    h = o_g * jnp.tanh(c)

    def address(k, beta, g, s, gamma, w_prev):
        dot = jnp.sum(k[:, None, :] * mem, axis=2)
        knorm = jnp.sqrt(jnp.sum(k * k, axis=1, keepdims=True))
        mnorm = jnp.sqrt(jnp.sum(mem * mem, axis=2))
        cos = dot / (jnp.maximum(knorm, 1e-8) * jnp.maximum(mnorm, 1e-8))
        wc = _softmax_ref(beta * cos)
        wg = g * wc + (1.0 - g) * w_prev
        ws = (s[:, 0:1] * jnp.roll(wg, 1, axis=1) + s[:, 1:2] * wg
              + s[:, 2:3] * jnp.roll(wg, -1, axis=1))
        ws = jnp.power(ws, gamma)
        return ws / (jnp.sum(ws, axis=1, keepdims=True) + 1e-16)

    out_r = h @ w_read + b_read
    w_r = address(jnp.tanh(out_r[:, 0:M]), _softplus(out_r[:, M:M + 1]),
                  _sigmoid_ref(out_r[:, M + 1:M + 2]),
                  _softmax_ref(out_r[:, M + 2:M + 5]),
                  1.0 + _softplus(out_r[:, M + 5:M + 6]), wprev_r)
    r = jnp.sum(w_r[:, :, None] * mem, axis=1)

    out_w = h @ w_write + b_write
    w_w = address(jnp.tanh(out_w[:, 0:M]), _softplus(out_w[:, M:M + 1]),
                  _sigmoid_ref(out_w[:, M + 1:M + 2]),
                  _softmax_ref(out_w[:, M + 2:M + 5]),
                  1.0 + _softplus(out_w[:, M + 5:M + 6]), wprev_w)
    a_vec = jnp.tanh(out_w[:, M + 6:2 * M + 6])
    e_vec = _sigmoid_ref(out_w[:, 2 * M + 6:3 * M + 6])
    mem_new = (mem * (1.0 - w_w[:, :, None] * e_vec[:, None, :])
               + w_w[:, :, None] * a_vec[:, None, :])

    o = _sigmoid_ref(h @ w_fc[0:H, :] + r @ w_fc[H:, :] + b_fc)
    return o, r, h, c, w_r, w_w, mem_new


# ----------------------------- main -------------------------------------------
if __name__ == "__main__":
    # Small NTM config (consistent with the module defaults used here)
    B = 2                 # batch_size
    num_inputs = 8
    num_outputs = 8
    H = 32                # controller_size
    R = 1                 # num_read_heads (kernel: 1 read + 1 write head)
    N, M = 16, 8          # memory rows / cols
    In = num_inputs + R * M    # LSTM input size

    key = jax.random.PRNGKey(0)
    ks = jax.random.split(key, 12)

    stdev = 5.0 / np.sqrt(In + H)
    w_ih = jax.random.uniform(ks[0], (In, 4 * H), minval=-stdev, maxval=stdev, dtype=jnp.float32)
    w_hh = jax.random.uniform(ks[1], (H, 4 * H), minval=-stdev, maxval=stdev, dtype=jnp.float32)
    b_lstm = jnp.zeros((1, 4 * H), jnp.float32)          # LSTM biases init to 0
    h0 = jax.random.normal(ks[2], (B, H), jnp.float32) * 0.05
    c0 = jax.random.normal(ks[3], (B, H), jnp.float32) * 0.05

    def xavier(k, fan_in, fan_out, gain):
        bound = gain * np.sqrt(6.0 / (fan_in + fan_out))
        return jax.random.uniform(k, (fan_in, fan_out), minval=-bound, maxval=bound,
                                  dtype=jnp.float32)

    w_read = xavier(ks[4], H, M + 6, 1.4)
    b_read = jax.random.normal(ks[5], (1, M + 6), jnp.float32) * 0.01
    w_write = xavier(ks[6], H, 3 * M + 6, 1.4)
    b_write = jax.random.normal(ks[7], (1, 3 * M + 6), jnp.float32) * 0.01
    w_fc = xavier(ks[8], H + R * M, num_outputs, 1.0)
    b_fc = jax.random.normal(ks[9], (1, num_outputs), jnp.float32) * 0.01

    init_r = jnp.tile(jax.random.normal(ks[10], (1, M), jnp.float32) * 0.01, (B, 1))
    x = jax.random.normal(ks[11], (B, num_inputs), jnp.float32)

    mem = jnp.full((B, N, M), 1e-6, jnp.float32)          # Memory mem_bias 'const' init
    wprev_r = jnp.zeros((B, N), jnp.float32)              # ReadHead.create_new_state
    wprev_w = jnp.zeros((B, N), jnp.float32)              # WriteHead.create_new_state

    args = (x, init_r, h0, c0, w_ih, w_hh, b_lstm, mem, wprev_r, wprev_w,
            w_read, b_read, w_write, b_write, w_fc, b_fc)

    outs = ntm_forward_pallas(*args)
    outs = jax.block_until_ready(outs)

    refs = ntm_forward_ref(*args)
    for got, want in zip(outs, refs):
        np.testing.assert_allclose(np.asarray(got), np.asarray(want),
                                   rtol=2e-3, atol=2e-3)

    print("KERNEL_OK")
</pallas_src>

<mosaic_0001>
module attributes {stable_mosaic.version = 11 : i64} {
  func.func @ntm_kernel(%arg0: memref<2x49xf32, #tpu.memory_space<vmem>>, %arg1: memref<2x32xf32, #tpu.memory_space<vmem>>, %arg2: memref<49x128xf32, #tpu.memory_space<vmem>>, %arg3: memref<2x16x8xf32, #tpu.memory_space<vmem>>, %arg4: memref<2x32xf32, #tpu.memory_space<vmem>>, %arg5: memref<32x52xf32, #tpu.memory_space<vmem>>, %arg6: memref<1x52xf32, #tpu.memory_space<vmem>>, %arg7: memref<8x8xf32, #tpu.memory_space<vmem>>, %arg8: memref<2x128xf32, #tpu.memory_space<vmem>>, %arg9: memref<2x16x8xf32, #tpu.memory_space<vmem>>) attributes {dimension_semantics = [], scalar_prefetch = 0 : i64, scratch_operands = 0 : i64, tpu.core_type = #tpu.core_type<tc>} {
    %c0 = arith.constant 0 : index
    %c0_0 = arith.constant 0 : index
    %0 = vector.load %arg0[%c0, %c0_0] : memref<2x49xf32, #tpu.memory_space<vmem>>, vector<2x49xf32>
    %c0_1 = arith.constant 0 : index
    %c0_2 = arith.constant 0 : index
    %1 = vector.load %arg2[%c0_1, %c0_2] : memref<49x128xf32, #tpu.memory_space<vmem>>, vector<49x128xf32>
    %cst = arith.constant dense<0.000000e+00> : vector<2x128xf32>
    %2 = tpu.matmul %0, %1, %cst {dimension_numbers = #tpu.dot_dimension_numbers<[1], [0], [0], [1], [0, 0, 1, 1], [], []>} : vector<2x49xf32>, vector<49x128xf32>, vector<2x128xf32> -> vector<2x128xf32>
    %3 = vector.extract_strided_slice %2 {offsets = [0, 0], sizes = [2, 32], strides = [1, 1]} : vector<2x128xf32> to vector<2x32xf32>
    %cst_3 = arith.constant 0.000000e+00 : f32
    %4 = vector.broadcast %cst_3 : f32 to vector<2x32xf32>
    %5 = arith.subf %4, %3 : vector<2x32xf32>
    %6 = math.exp %5 : vector<2x32xf32>
    %cst_4 = arith.constant 1.000000e+00 : f32
    %7 = vector.broadcast %cst_4 : f32 to vector<2x32xf32>
    %8 = arith.addf %7, %6 : vector<2x32xf32>
    %9 = tpu.reciprocal %8 {approx = true} : vector<2x32xf32> -> vector<2x32xf32>
    %10 = vector.extract_strided_slice %2 {offsets = [0, 32], sizes = [2, 32], strides = [1, 1]} : vector<2x128xf32> to vector<2x32xf32>
    %cst_5 = arith.constant 0.000000e+00 : f32
    %11 = vector.broadcast %cst_5 : f32 to vector<2x32xf32>
    %12 = arith.subf %11, %10 : vector<2x32xf32>
    %13 = math.exp %12 : vector<2x32xf32>
    %cst_6 = arith.constant 1.000000e+00 : f32
    %14 = vector.broadcast %cst_6 : f32 to vector<2x32xf32>
    %15 = arith.addf %14, %13 : vector<2x32xf32>
    %16 = tpu.reciprocal %15 {approx = true} : vector<2x32xf32> -> vector<2x32xf32>
    %17 = vector.extract_strided_slice %2 {offsets = [0, 64], sizes = [2, 32], strides = [1, 1]} : vector<2x128xf32> to vector<2x32xf32>
    %18 = math.tanh %17 : vector<2x32xf32>
    %19 = vector.extract_strided_slice %2 {offsets = [0, 96], sizes = [2, 32], strides = [1, 1]} : vector<2x128xf32> to vector<2x32xf32>
    %cst_7 = arith.constant 0.000000e+00 : f32
    %20 = vector.broadcast %cst_7 : f32 to vector<2x32xf32>
    %21 = arith.subf %20, %19 : vector<2x32xf32>
    %22 = math.exp %21 : vector<2x32xf32>
    %cst_8 = arith.constant 1.000000e+00 : f32
    %23 = vector.broadcast %cst_8 : f32 to vector<2x32xf32>
    %24 = arith.addf %23, %22 : vector<2x32xf32>
    %25 = tpu.reciprocal %24 {approx = true} : vector<2x32xf32> -> vector<2x32xf32>
    %c0_9 = arith.constant 0 : index
    %c0_10 = arith.constant 0 : index
    %26 = vector.load %arg1[%c0_9, %c0_10] : memref<2x32xf32, #tpu.memory_space<vmem>>, vector<2x32xf32>
    %27 = arith.mulf %16, %26 : vector<2x32xf32>
    %28 = arith.mulf %9, %18 : vector<2x32xf32>
    %29 = arith.addf %27, %28 : vector<2x32xf32>
    %30 = math.tanh %29 : vector<2x32xf32>
    %31 = arith.mulf %25, %30 : vector<2x32xf32>
    %c0_11 = arith.constant 0 : index
    %c0_12 = arith.constant 0 : index
    %c0_13 = arith.constant 0 : index
    %32 = vector.load %arg3[%c0_11, %c0_12, %c0_13] : memref<2x16x8xf32, #tpu.memory_space<vmem>>, vector<2x16x8xf32>
    %33 = tpu.iota {dimensions = array<i32: 0>} : vector<16x16xi32>
    %34 = tpu.iota {dimensions = array<i32: 1>} : vector<16x16xi32>
    %c1_i32 = arith.constant 1 : i32
    %35 = vector.broadcast %c1_i32 : i32 to vector<16x16xi32>
    %36 = arith.addi %33, %35 : vector<16x16xi32>
    %37 = arith.cmpi eq, %34, %36 : vector<16x16xi32>
    %c15_i32 = arith.constant 15 : i32
    %38 = vector.broadcast %c15_i32 : i32 to vector<16x16xi32>
    %39 = arith.cmpi eq, %33, %38 : vector<16x16xi32>
    %c0_i32 = arith.constant 0 : i32
    %40 = vector.broadcast %c0_i32 : i32 to vector<16x16xi32>
    %41 = arith.cmpi eq, %34, %40 : vector<16x16xi32>
    %42 = arith.andi %39, %41 : vector<16x16xi1>
    %43 = arith.ori %37, %42 : vector<16x16xi1>
    %44 = arith.extui %43 : vector<16x16xi1> to vector<16x16xi32>
    %45 = arith.sitofp %44 : vector<16x16xi32> to vector<16x16xf32>
    %c1_i32_14 = arith.constant 1 : i32
    %46 = vector.broadcast %c1_i32_14 : i32 to vector<16x16xi32>
    %47 = arith.subi %33, %46 : vector<16x16xi32>
    %48 = arith.cmpi eq, %34, %47 : vector<16x16xi32>
    %c0_i32_15 = arith.constant 0 : i32
    %49 = vector.broadcast %c0_i32_15 : i32 to vector<16x16xi32>
    %50 = arith.cmpi eq, %33, %49 : vector<16x16xi32>
    %c15_i32_16 = arith.constant 15 : i32
    %51 = vector.broadcast %c15_i32_16 : i32 to vector<16x16xi32>
    %52 = arith.cmpi eq, %34, %51 : vector<16x16xi32>
    %53 = arith.andi %50, %52 : vector<16x16xi1>
    %54 = arith.ori %48, %53 : vector<16x16xi1>
    %55 = arith.extui %54 : vector<16x16xi1> to vector<16x16xi32>
    %56 = arith.sitofp %55 : vector<16x16xi32> to vector<16x16xf32>
    %c0_17 = arith.constant 0 : index
    %c0_18 = arith.constant 0 : index
    %57 = vector.load %arg5[%c0_17, %c0_18] : memref<32x52xf32, #tpu.memory_space<vmem>>, vector<32x52xf32>
    %cst_19 = arith.constant dense<0.000000e+00> : vector<2x52xf32>
    %58 = tpu.matmul %31, %57, %cst_19 {dimension_numbers = #tpu.dot_dimension_numbers<[1], [0], [0], [1], [0, 0, 1, 1], [], []>} : vector<2x32xf32>, vector<32x52xf32>, vector<2x52xf32> -> vector<2x52xf32>
    %c0_20 = arith.constant 0 : index
    %c0_21 = arith.constant 0 : index
    %59 = vector.load %arg6[%c0_20, %c0_21] : memref<1x52xf32, #tpu.memory_space<vmem>>, vector<1x52xf32>
    %60 = vector.broadcast %59 : vector<1x52xf32> to vector<2x52xf32>
    %61 = arith.addf %58, %60 : vector<2x52xf32>
    %62 = vector.extract_strided_slice %61 {offsets = [0, 0], sizes = [2, 8], strides = [1, 1]} : vector<2x52xf32> to vector<2x8xf32>
    %63 = math.tanh %62 : vector<2x8xf32>
    %64 = vector.extract_strided_slice %61 {offsets = [0, 8], sizes = [2, 1], strides = [1, 1]} : vector<2x52xf32> to vector<2x1xf32>
    %cst_22 = arith.constant 0.000000e+00 : f32
    %65 = vector.broadcast %cst_22 : f32 to vector<2x1xf32>
    %66 = arith.maximumf %64, %65 : vector<2x1xf32>
    %67 = math.absf %64 : vector<2x1xf32>
    %cst_23 = arith.constant 0.000000e+00 : f32
    %68 = vector.broadcast %cst_23 : f32 to vector<2x1xf32>
    %69 = arith.subf %68, %67 : vector<2x1xf32>
    %70 = math.exp %69 : vector<2x1xf32>
    %71 = math.log1p %70 : vector<2x1xf32>
    %72 = arith.addf %66, %71 : vector<2x1xf32>
    %73 = vector.extract_strided_slice %61 {offsets = [0, 9], sizes = [2, 1], strides = [1, 1]} : vector<2x52xf32> to vector<2x1xf32>
    %cst_24 = arith.constant 0.000000e+00 : f32
    %74 = vector.broadcast %cst_24 : f32 to vector<2x1xf32>
    %75 = arith.subf %74, %73 : vector<2x1xf32>
    %76 = math.exp %75 : vector<2x1xf32>
    %cst_25 = arith.constant 1.000000e+00 : f32
    %77 = vector.broadcast %cst_25 : f32 to vector<2x1xf32>
    %78 = arith.addf %77, %76 : vector<2x1xf32>
    %79 = tpu.reciprocal %78 {approx = true} : vector<2x1xf32> -> vector<2x1xf32>
    %80 = vector.extract_strided_slice %61 {offsets = [0, 10], sizes = [2, 3], strides = [1, 1]} : vector<2x52xf32> to vector<2x3xf32>
    %cst_26 = arith.constant dense<0xFF800000> : vector<2xf32>
    %81 = vector.multi_reduction <maximumf>, %80, %cst_26 [1] : vector<2x3xf32> to vector<2xf32>
    %82 = vector.shape_cast %81 : vector<2xf32> to vector<2x1xf32>
    %83 = vector.broadcast %82 : vector<2x1xf32> to vector<2x3xf32>
    %84 = arith.subf %80, %83 : vector<2x3xf32>
    %85 = math.exp %84 : vector<2x3xf32>
    %cst_27 = arith.constant dense<0.000000e+00> : vector<2xf32>
    %86 = vector.multi_reduction <add>, %85, %cst_27 [1] : vector<2x3xf32> to vector<2xf32>
    %87 = vector.shape_cast %86 : vector<2xf32> to vector<2x1xf32>
    %88 = tpu.reciprocal %87 {approx = true} : vector<2x1xf32> -> vector<2x1xf32>
    %89 = vector.broadcast %88 : vector<2x1xf32> to vector<2x3xf32>
    %90 = arith.mulf %85, %89 : vector<2x3xf32>
    %91 = vector.extract_strided_slice %61 {offsets = [0, 13], sizes = [2, 1], strides = [1, 1]} : vector<2x52xf32> to vector<2x1xf32>
    %cst_28 = arith.constant 0.000000e+00 : f32
    %92 = vector.broadcast %cst_28 : f32 to vector<2x1xf32>
    %93 = arith.maximumf %91, %92 : vector<2x1xf32>
    %94 = math.absf %91 : vector<2x1xf32>
    %cst_29 = arith.constant 0.000000e+00 : f32
    %95 = vector.broadcast %cst_29 : f32 to vector<2x1xf32>
    %96 = arith.subf %95, %94 : vector<2x1xf32>
    %97 = math.exp %96 : vector<2x1xf32>
    %98 = math.log1p %97 : vector<2x1xf32>
    %99 = arith.addf %93, %98 : vector<2x1xf32>
    %cst_30 = arith.constant 1.000000e+00 : f32
    %100 = vector.broadcast %cst_30 : f32 to vector<2x1xf32>
    %101 = arith.addf %100, %99 : vector<2x1xf32>
    %102 = vector.extract_strided_slice %61 {offsets = [0, 14], sizes = [2, 8], strides = [1, 1]} : vector<2x52xf32> to vector<2x8xf32>
    %103 = math.tanh %102 : vector<2x8xf32>
    %104 = vector.extract_strided_slice %61 {offsets = [0, 22], sizes = [2, 1], strides = [1, 1]} : vector<2x52xf32> to vector<2x1xf32>
    %cst_31 = arith.constant 0.000000e+00 : f32
    %105 = vector.broadcast %cst_31 : f32 to vector<2x1xf32>
    %106 = arith.maximumf %104, %105 : vector<2x1xf32>
    %107 = math.absf %104 : vector<2x1xf32>
    %cst_32 = arith.constant 0.000000e+00 : f32
    %108 = vector.broadcast %cst_32 : f32 to vector<2x1xf32>
    %109 = arith.subf %108, %107 : vector<2x1xf32>
    %110 = math.exp %109 : vector<2x1xf32>
    %111 = math.log1p %110 : vector<2x1xf32>
    %112 = arith.addf %106, %111 : vector<2x1xf32>
    %113 = vector.extract_strided_slice %61 {offsets = [0, 23], sizes = [2, 1], strides = [1, 1]} : vector<2x52xf32> to vector<2x1xf32>
    %cst_33 = arith.constant 0.000000e+00 : f32
    %114 = vector.broadcast %cst_33 : f32 to vector<2x1xf32>
    %115 = arith.subf %114, %113 : vector<2x1xf32>
    %116 = math.exp %115 : vector<2x1xf32>
    %cst_34 = arith.constant 1.000000e+00 : f32
    %117 = vector.broadcast %cst_34 : f32 to vector<2x1xf32>
    %118 = arith.addf %117, %116 : vector<2x1xf32>
    %119 = tpu.reciprocal %118 {approx = true} : vector<2x1xf32> -> vector<2x1xf32>
    %120 = vector.extract_strided_slice %61 {offsets = [0, 24], sizes = [2, 3], strides = [1, 1]} : vector<2x52xf32> to vector<2x3xf32>
    %cst_35 = arith.constant dense<0xFF800000> : vector<2xf32>
    %121 = vector.multi_reduction <maximumf>, %120, %cst_35 [1] : vector<2x3xf32> to vector<2xf32>
    %122 = vector.shape_cast %121 : vector<2xf32> to vector<2x1xf32>
    %123 = vector.broadcast %122 : vector<2x1xf32> to vector<2x3xf32>
    %124 = arith.subf %120, %123 : vector<2x3xf32>
    %125 = math.exp %124 : vector<2x3xf32>
    %cst_36 = arith.constant dense<0.000000e+00> : vector<2xf32>
    %126 = vector.multi_reduction <add>, %125, %cst_36 [1] : vector<2x3xf32> to vector<2xf32>
    %127 = vector.shape_cast %126 : vector<2xf32> to vector<2x1xf32>
    %128 = tpu.reciprocal %127 {approx = true} : vector<2x1xf32> -> vector<2x1xf32>
    %129 = vector.broadcast %128 : vector<2x1xf32> to vector<2x3xf32>
    %130 = arith.mulf %125, %129 : vector<2x3xf32>
    %131 = vector.extract_strided_slice %61 {offsets = [0, 27], sizes = [2, 1], strides = [1, 1]} : vector<2x52xf32> to vector<2x1xf32>
    %cst_37 = arith.constant 0.000000e+00 : f32
    %132 = vector.broadcast %cst_37 : f32 to vector<2x1xf32>
    %133 = arith.maximumf %131, %132 : vector<2x1xf32>
    %134 = math.absf %131 : vector<2x1xf32>
    %cst_38 = arith.constant 0.000000e+00 : f32
    %135 = vector.broadcast %cst_38 : f32 to vector<2x1xf32>
    %136 = arith.subf %135, %134 : vector<2x1xf32>
    %137 = math.exp %136 : vector<2x1xf32>
    %138 = math.log1p %137 : vector<2x1xf32>
    %139 = arith.addf %133, %138 : vector<2x1xf32>
    %cst_39 = arith.constant 1.000000e+00 : f32
    %140 = vector.broadcast %cst_39 : f32 to vector<2x1xf32>
    %141 = arith.addf %140, %139 : vector<2x1xf32>
    %142 = vector.extract_strided_slice %61 {offsets = [0, 28], sizes = [2, 8], strides = [1, 1]} : vector<2x52xf32> to vector<2x8xf32>
    %143 = math.tanh %142 : vector<2x8xf32>
    %144 = vector.extract_strided_slice %61 {offsets = [0, 36], sizes = [2, 8], strides = [1, 1]} : vector<2x52xf32> to vector<2x8xf32>
    %cst_40 = arith.constant 0.000000e+00 : f32
    %145 = vector.broadcast %cst_40 : f32 to vector<2x8xf32>
    %146 = arith.subf %145, %144 : vector<2x8xf32>
    %147 = math.exp %146 : vector<2x8xf32>
    %cst_41 = arith.constant 1.000000e+00 : f32
    %148 = vector.broadcast %cst_41 : f32 to vector<2x8xf32>
    %149 = arith.addf %148, %147 : vector<2x8xf32>
    %150 = tpu.reciprocal %149 {approx = true} : vector<2x8xf32> -> vector<2x8xf32>
    %151 = vector.extract_strided_slice %61 {offsets = [0, 44], sizes = [2, 8], strides = [1, 1]} : vector<2x52xf32> to vector<2x8xf32>
    %c0_42 = arith.constant 0 : index
    %c0_43 = arith.constant 0 : index
    %152 = vector.load %arg4[%c0_42, %c0_43] : memref<2x32xf32, #tpu.memory_space<vmem>>, vector<2x32xf32>
    %153 = vector.extract_strided_slice %152 {offsets = [0, 0], sizes = [2, 16], strides = [1, 1]} : vector<2x32xf32> to vector<2x16xf32>
    %154 = vector.shape_cast %63 : vector<2x8xf32> to vector<2x1x8xf32>
    %155 = vector.broadcast %154 : vector<2x1x8xf32> to vector<2x16x8xf32>
    %156 = arith.mulf %155, %32 : vector<2x16x8xf32>
    %cst_44 = arith.constant dense<0.000000e+00> : vector<2x16xf32>
    %157 = vector.multi_reduction <add>, %156, %cst_44 [2] : vector<2x16x8xf32> to vector<2x16xf32>
    %158 = arith.mulf %63, %63 : vector<2x8xf32>
    %cst_45 = arith.constant dense<0.000000e+00> : vector<2xf32>
    %159 = vector.multi_reduction <add>, %158, %cst_45 [1] : vector<2x8xf32> to vector<2xf32>
    %160 = vector.shape_cast %159 : vector<2xf32> to vector<2x1xf32>
    %161 = math.sqrt %160 : vector<2x1xf32>
    %162 = arith.mulf %32, %32 : vector<2x16x8xf32>
    %cst_46 = arith.constant dense<0.000000e+00> : vector<2x16xf32>
    %163 = vector.multi_reduction <add>, %162, %cst_46 [2] : vector<2x16x8xf32> to vector<2x16xf32>
    %164 = math.sqrt %163 : vector<2x16xf32>
    %cst_47 = arith.constant 9.99999993E-9 : f32
    %165 = vector.broadcast %cst_47 : f32 to vector<2x1xf32>
    %166 = arith.maximumf %161, %165 : vector<2x1xf32>
    %cst_48 = arith.constant 9.99999993E-9 : f32
    %167 = vector.broadcast %cst_48 : f32 to vector<2x16xf32>
    %168 = arith.maximumf %164, %167 : vector<2x16xf32>
    %169 = vector.broadcast %166 : vector<2x1xf32> to vector<2x16xf32>
    %170 = arith.mulf %169, %168 : vector<2x16xf32>
    %171 = tpu.reciprocal %170 {approx = true} : vector<2x16xf32> -> vector<2x16xf32>
    %172 = arith.mulf %157, %171 : vector<2x16xf32>
    %173 = vector.broadcast %72 : vector<2x1xf32> to vector<2x16xf32>
    %174 = arith.mulf %173, %172 : vector<2x16xf32>
    %cst_49 = arith.constant dense<0xFF800000> : vector<2xf32>
    %175 = vector.multi_reduction <maximumf>, %174, %cst_49 [1] : vector<2x16xf32> to vector<2xf32>
    %176 = vector.shape_cast %175 : vector<2xf32> to vector<2x1xf32>
    %177 = vector.broadcast %176 : vector<2x1xf32> to vector<2x16xf32>
    %178 = arith.subf %174, %177 : vector<2x16xf32>
    %179 = math.exp %178 : vector<2x16xf32>
    %cst_50 = arith.constant dense<0.000000e+00> : vector<2xf32>
    %180 = vector.multi_reduction <add>, %179, %cst_50 [1] : vector<2x16xf32> to vector<2xf32>
    %181 = vector.shape_cast %180 : vector<2xf32> to vector<2x1xf32>
    %182 = tpu.reciprocal %181 {approx = true} : vector<2x1xf32> -> vector<2x1xf32>
    %183 = vector.broadcast %182 : vector<2x1xf32> to vector<2x16xf32>
    %184 = arith.mulf %179, %183 : vector<2x16xf32>
    %185 = vector.broadcast %79 : vector<2x1xf32> to vector<2x16xf32>
    %186 = arith.mulf %185, %184 : vector<2x16xf32>
    %cst_51 = arith.constant 1.000000e+00 : f32
    %187 = vector.broadcast %cst_51 : f32 to vector<2x1xf32>
    %188 = arith.subf %187, %79 : vector<2x1xf32>
    %189 = vector.broadcast %188 : vector<2x1xf32> to vector<2x16xf32>
    %190 = arith.mulf %189, %153 : vector<2x16xf32>
    %191 = arith.addf %186, %190 : vector<2x16xf32>
    %cst_52 = arith.constant dense<0.000000e+00> : vector<2x16xf32>
    %192 = tpu.matmul %191, %45, %cst_52 {dimension_numbers = #tpu.dot_dimension_numbers<[1], [0], [0], [1], [0, 0, 1, 1], [], []>} : vector<2x16xf32>, vector<16x16xf32>, vector<2x16xf32> -> vector<2x16xf32>
    %cst_53 = arith.constant dense<0.000000e+00> : vector<2x16xf32>
    %193 = tpu.matmul %191, %56, %cst_53 {dimension_numbers = #tpu.dot_dimension_numbers<[1], [0], [0], [1], [0, 0, 1, 1], [], []>} : vector<2x16xf32>, vector<16x16xf32>, vector<2x16xf32> -> vector<2x16xf32>
    %194 = vector.extract_strided_slice %90 {offsets = [0, 0], sizes = [2, 1], strides = [1, 1]} : vector<2x3xf32> to vector<2x1xf32>
    %195 = vector.broadcast %194 : vector<2x1xf32> to vector<2x16xf32>
    %196 = arith.mulf %195, %192 : vector<2x16xf32>
    %197 = vector.extract_strided_slice %90 {offsets = [0, 1], sizes = [2, 1], strides = [1, 1]} : vector<2x3xf32> to vector<2x1xf32>
    %198 = vector.broadcast %197 : vector<2x1xf32> to vector<2x16xf32>
    %199 = arith.mulf %198, %191 : vector<2x16xf32>
    %200 = arith.addf %196, %199 : vector<2x16xf32>
    %201 = vector.extract_strided_slice %90 {offsets = [0, 2], sizes = [2, 1], strides = [1, 1]} : vector<2x3xf32> to vector<2x1xf32>
    %202 = vector.broadcast %201 : vector<2x1xf32> to vector<2x16xf32>
    %203 = arith.mulf %202, %193 : vector<2x16xf32>
    %204 = arith.addf %200, %203 : vector<2x16xf32>
    %205 = vector.broadcast %101 : vector<2x1xf32> to vector<2x16xf32>
    %206 = math.powf %204, %205 : vector<2x16xf32>
    %cst_54 = arith.constant dense<0.000000e+00> : vector<2xf32>
    %207 = vector.multi_reduction <add>, %206, %cst_54 [1] : vector<2x16xf32> to vector<2xf32>
    %208 = vector.shape_cast %207 : vector<2xf32> to vector<2x1xf32>
    %cst_55 = arith.constant 1.000000e-16 : f32
    %209 = vector.broadcast %cst_55 : f32 to vector<2x1xf32>
    %210 = arith.addf %208, %209 : vector<2x1xf32>
    %211 = tpu.reciprocal %210 {approx = true} : vector<2x1xf32> -> vector<2x1xf32>
    %212 = vector.broadcast %211 : vector<2x1xf32> to vector<2x16xf32>
    %213 = arith.mulf %206, %212 : vector<2x16xf32>
    %214 = vector.shape_cast %213 : vector<2x16xf32> to vector<2x16x1xf32>
    %215 = vector.broadcast %214 : vector<2x16x1xf32> to vector<2x16x8xf32>
    %216 = arith.mulf %215, %32 : vector<2x16x8xf32>
    %cst_56 = arith.constant dense<0.000000e+00> : vector<2x8xf32>
    %217 = vector.multi_reduction <add>, %216, %cst_56 [1] : vector<2x16x8xf32> to vector<2x8xf32>
    %218 = vector.extract_strided_slice %152 {offsets = [0, 16], sizes = [2, 16], strides = [1, 1]} : vector<2x32xf32> to vector<2x16xf32>
    %219 = vector.shape_cast %103 : vector<2x8xf32> to vector<2x1x8xf32>
    %220 = vector.broadcast %219 : vector<2x1x8xf32> to vector<2x16x8xf32>
    %221 = arith.mulf %220, %32 : vector<2x16x8xf32>
    %cst_57 = arith.constant dense<0.000000e+00> : vector<2x16xf32>
    %222 = vector.multi_reduction <add>, %221, %cst_57 [2] : vector<2x16x8xf32> to vector<2x16xf32>
    %223 = arith.mulf %103, %103 : vector<2x8xf32>
    %cst_58 = arith.constant dense<0.000000e+00> : vector<2xf32>
    %224 = vector.multi_reduction <add>, %223, %cst_58 [1] : vector<2x8xf32> to vector<2xf32>
    %225 = vector.shape_cast %224 : vector<2xf32> to vector<2x1xf32>
    %226 = math.sqrt %225 : vector<2x1xf32>
    %227 = arith.mulf %32, %32 : vector<2x16x8xf32>
    %cst_59 = arith.constant dense<0.000000e+00> : vector<2x16xf32>
    %228 = vector.multi_reduction <add>, %227, %cst_59 [2] : vector<2x16x8xf32> to vector<2x16xf32>
    %229 = math.sqrt %228 : vector<2x16xf32>
    %cst_60 = arith.constant 9.99999993E-9 : f32
    %230 = vector.broadcast %cst_60 : f32 to vector<2x1xf32>
    %231 = arith.maximumf %226, %230 : vector<2x1xf32>
    %cst_61 = arith.constant 9.99999993E-9 : f32
    %232 = vector.broadcast %cst_61 : f32 to vector<2x16xf32>
    %233 = arith.maximumf %229, %232 : vector<2x16xf32>
    %234 = vector.broadcast %231 : vector<2x1xf32> to vector<2x16xf32>
    %235 = arith.mulf %234, %233 : vector<2x16xf32>
    %236 = tpu.reciprocal %235 {approx = true} : vector<2x16xf32> -> vector<2x16xf32>
    %237 = arith.mulf %222, %236 : vector<2x16xf32>
    %238 = vector.broadcast %112 : vector<2x1xf32> to vector<2x16xf32>
    %239 = arith.mulf %238, %237 : vector<2x16xf32>
    %cst_62 = arith.constant dense<0xFF800000> : vector<2xf32>
    %240 = vector.multi_reduction <maximumf>, %239, %cst_62 [1] : vector<2x16xf32> to vector<2xf32>
    %241 = vector.shape_cast %240 : vector<2xf32> to vector<2x1xf32>
    %242 = vector.broadcast %241 : vector<2x1xf32> to vector<2x16xf32>
    %243 = arith.subf %239, %242 : vector<2x16xf32>
    %244 = math.exp %243 : vector<2x16xf32>
    %cst_63 = arith.constant dense<0.000000e+00> : vector<2xf32>
    %245 = vector.multi_reduction <add>, %244, %cst_63 [1] : vector<2x16xf32> to vector<2xf32>
    %246 = vector.shape_cast %245 : vector<2xf32> to vector<2x1xf32>
    %247 = tpu.reciprocal %246 {approx = true} : vector<2x1xf32> -> vector<2x1xf32>
    %248 = vector.broadcast %247 : vector<2x1xf32> to vector<2x16xf32>
    %249 = arith.mulf %244, %248 : vector<2x16xf32>
    %250 = vector.broadcast %119 : vector<2x1xf32> to vector<2x16xf32>
    %251 = arith.mulf %250, %249 : vector<2x16xf32>
    %cst_64 = arith.constant 1.000000e+00 : f32
    %252 = vector.broadcast %cst_64 : f32 to vector<2x1xf32>
    %253 = arith.subf %252, %119 : vector<2x1xf32>
    %254 = vector.broadcast %253 : vector<2x1xf32> to vector<2x16xf32>
    %255 = arith.mulf %254, %218 : vector<2x16xf32>
    %256 = arith.addf %251, %255 : vector<2x16xf32>
    %cst_65 = arith.constant dense<0.000000e+00> : vector<2x16xf32>
    %257 = tpu.matmul %256, %45, %cst_65 {dimension_numbers = #tpu.dot_dimension_numbers<[1], [0], [0], [1], [0, 0, 1, 1], [], []>} : vector<2x16xf32>, vector<16x16xf32>, vector<2x16xf32> -> vector<2x16xf32>
    %cst_66 = arith.constant dense<0.000000e+00> : vector<2x16xf32>
    %258 = tpu.matmul %256, %56, %cst_66 {dimension_numbers = #tpu.dot_dimension_numbers<[1], [0], [0], [1], [0, 0, 1, 1], [], []>} : vector<2x16xf32>, vector<16x16xf32>, vector<2x16xf32> -> vector<2x16xf32>
    %259 = vector.extract_strided_slice %130 {offsets = [0, 0], sizes = [2, 1], strides = [1, 1]} : vector<2x3xf32> to vector<2x1xf32>
    %260 = vector.broadcast %259 : vector<2x1xf32> to vector<2x16xf32>
    %261 = arith.mulf %260, %257 : vector<2x16xf32>
    %262 = vector.extract_strided_slice %130 {offsets = [0, 1], sizes = [2, 1], strides = [1, 1]} : vector<2x3xf32> to vector<2x1xf32>
    %263 = vector.broadcast %262 : vector<2x1xf32> to vector<2x16xf32>
    %264 = arith.mulf %263, %256 : vector<2x16xf32>
    %265 = arith.addf %261, %264 : vector<2x16xf32>
    %266 = vector.extract_strided_slice %130 {offsets = [0, 2], sizes = [2, 1], strides = [1, 1]} : vector<2x3xf32> to vector<2x1xf32>
    %267 = vector.broadcast %266 : vector<2x1xf32> to vector<2x16xf32>
    %268 = arith.mulf %267, %258 : vector<2x16xf32>
    %269 = arith.addf %265, %268 : vector<2x16xf32>
    %270 = vector.broadcast %141 : vector<2x1xf32> to vector<2x16xf32>
    %271 = math.powf %269, %270 : vector<2x16xf32>
    %cst_67 = arith.constant dense<0.000000e+00> : vector<2xf32>
    %272 = vector.multi_reduction <add>, %271, %cst_67 [1] : vector<2x16xf32> to vector<2xf32>
    %273 = vector.shape_cast %272 : vector<2xf32> to vector<2x1xf32>
    %cst_68 = arith.constant 1.000000e-16 : f32
    %274 = vector.broadcast %cst_68 : f32 to vector<2x1xf32>
    %275 = arith.addf %273, %274 : vector<2x1xf32>
    %276 = tpu.reciprocal %275 {approx = true} : vector<2x1xf32> -> vector<2x1xf32>
    %277 = vector.broadcast %276 : vector<2x1xf32> to vector<2x16xf32>
    %278 = arith.mulf %271, %277 : vector<2x16xf32>
    %279 = vector.shape_cast %278 : vector<2x16xf32> to vector<2x16x1xf32>
    %280 = vector.shape_cast %150 : vector<2x8xf32> to vector<2x1x8xf32>
    %281 = vector.broadcast %279 : vector<2x16x1xf32> to vector<2x16x8xf32>
    %282 = vector.broadcast %280 : vector<2x1x8xf32> to vector<2x16x8xf32>
    %283 = arith.mulf %281, %282 : vector<2x16x8xf32>
    %284 = vector.shape_cast %278 : vector<2x16xf32> to vector<2x16x1xf32>
    %285 = vector.shape_cast %143 : vector<2x8xf32> to vector<2x1x8xf32>
    %286 = vector.broadcast %284 : vector<2x16x1xf32> to vector<2x16x8xf32>
    %287 = vector.broadcast %285 : vector<2x1x8xf32> to vector<2x16x8xf32>
    %288 = arith.mulf %286, %287 : vector<2x16x8xf32>
    %cst_69 = arith.constant 1.000000e+00 : f32
    %289 = vector.broadcast %cst_69 : f32 to vector<2x16x8xf32>
    %290 = arith.subf %289, %283 : vector<2x16x8xf32>
    %291 = arith.mulf %32, %290 : vector<2x16x8xf32>
    %292 = arith.addf %291, %288 : vector<2x16x8xf32>
    %c0_70 = arith.constant 0 : index
    %c0_71 = arith.constant 0 : index
    %c0_72 = arith.constant 0 : index
    %293 = vector.load %arg9[%c0_70, %c0_71, %c0_72] : memref<2x16x8xf32, #tpu.memory_space<vmem>>, vector<2x16x8xf32>
    tpu.vector_store %arg9[%c0_70, %c0_71, %c0_72], %292 {strides = array<i32>} : memref<2x16x8xf32, #tpu.memory_space<vmem>>, vector<2x16x8xf32>,
    %c0_73 = arith.constant 0 : index
    %c0_74 = arith.constant 0 : index
    %294 = vector.load %arg7[%c0_73, %c0_74] : memref<8x8xf32, #tpu.memory_space<vmem>>, vector<8x8xf32>
    %cst_75 = arith.constant dense<0.000000e+00> : vector<2x8xf32>
    %295 = tpu.matmul %217, %294, %cst_75 {dimension_numbers = #tpu.dot_dimension_numbers<[1], [0], [0], [1], [0, 0, 1, 1], [], []>} : vector<2x8xf32>, vector<8x8xf32>, vector<2x8xf32> -> vector<2x8xf32>
    %296 = arith.addf %151, %295 : vector<2x8xf32>
    %cst_76 = arith.constant 0.000000e+00 : f32
    %297 = vector.broadcast %cst_76 : f32 to vector<2x8xf32>
    %298 = arith.subf %297, %296 : vector<2x8xf32>
    %299 = math.exp %298 : vector<2x8xf32>
    %cst_77 = arith.constant 1.000000e+00 : f32
    %300 = vector.broadcast %cst_77 : f32 to vector<2x8xf32>
    %301 = arith.addf %300, %299 : vector<2x8xf32>
    %302 = tpu.reciprocal %301 {approx = true} : vector<2x8xf32> -> vector<2x8xf32>
    %c0_78 = arith.constant 0 : index
    %c0_79 = arith.constant 0 : index
    %303 = vector.load %arg8[%c0_78, %c0_79] : memref<2x128xf32, #tpu.memory_space<vmem>>, vector<2x8xf32>
    tpu.vector_store %arg8[%c0_78, %c0_79], %302 {strides = array<i32>} : memref<2x128xf32, #tpu.memory_space<vmem>>, vector<2x8xf32>,
    %c0_80 = arith.constant 0 : index
    %c8 = arith.constant 8 : index
    %304 = vector.load %arg8[%c0_80, %c8] : memref<2x128xf32, #tpu.memory_space<vmem>>, vector<2x8xf32>
    tpu.vector_store %arg8[%c0_80, %c8], %217 {strides = array<i32>} : memref<2x128xf32, #tpu.memory_space<vmem>>, vector<2x8xf32>,
    %c0_81 = arith.constant 0 : index
    %c16 = arith.constant 16 : index
    %305 = vector.load %arg8[%c0_81, %c16] : memref<2x128xf32, #tpu.memory_space<vmem>>, vector<2x32xf32>
    tpu.vector_store %arg8[%c0_81, %c16], %31 {strides = array<i32>} : memref<2x128xf32, #tpu.memory_space<vmem>>, vector<2x32xf32>,
    %c0_82 = arith.constant 0 : index
    %c48 = arith.constant 48 : index
    %306 = vector.load %arg8[%c0_82, %c48] : memref<2x128xf32, #tpu.memory_space<vmem>>, vector<2x32xf32>
    tpu.vector_store %arg8[%c0_82, %c48], %29 {strides = array<i32>} : memref<2x128xf32, #tpu.memory_space<vmem>>, vector<2x32xf32>,
    %c0_83 = arith.constant 0 : index
    %c80 = arith.constant 80 : index
    %307 = vector.load %arg8[%c0_83, %c80] : memref<2x128xf32, #tpu.memory_space<vmem>>, vector<2x16xf32>
    tpu.vector_store %arg8[%c0_83, %c80], %213 {strides = array<i32>} : memref<2x128xf32, #tpu.memory_space<vmem>>, vector<2x16xf32>,
    %c0_84 = arith.constant 0 : index
    %c96 = arith.constant 96 : index
    %308 = vector.load %arg8[%c0_84, %c96] : memref<2x128xf32, #tpu.memory_space<vmem>>, vector<2x16xf32>
    tpu.vector_store %arg8[%c0_84, %c96], %278 {strides = array<i32>} : memref<2x128xf32, #tpu.memory_space<vmem>>, vector<2x16xf32>,
    %cst_85 = arith.constant 0.000000e+00 : f32
    %309 = vector.broadcast %cst_85 : f32 to vector<2x16xf32>
    %c0_86 = arith.constant 0 : index
    %c112 = arith.constant 112 : index
    %310 = vector.load %arg8[%c0_86, %c112] : memref<2x128xf32, #tpu.memory_space<vmem>>, vector<2x16xf32>
    tpu.vector_store %arg8[%c0_86, %c112], %309 {strides = array<i32>} : memref<2x128xf32, #tpu.memory_space<vmem>>, vector<2x16xf32>,
    return
  }
}

</mosaic_0001>

<llo_original>
// kernel: tpu_custom_call.1
$region0: #{tpu_custom_call.1}
  #allocation0 [shape = 'u32[]', space=smem, size = 0x4, offset = 0x4, fixed_abs, tag = 'smem constant byte address 0x4 - core index']
  #allocation1 [shape = 'u32[144,128]{1,0:T(1,128)}', space=vmem, size = 0x12000, scoped, tag = 'internal scratch']
  %s0 = inlined_call_operand.vmem [shape: f32[2,49], index: 0, kind: input, shape index: {}]
  %s1 = inlined_call_operand.vmem [shape: f32[2,32], index: 1, kind: input, shape index: {}]
  %s2 = inlined_call_operand.hbm [shape: f32[49,128], index: 2, kind: input, shape index: {}]
  %s3 = inlined_call_operand.vmem [shape: f32[2,16,8], index: 3, kind: input, shape index: {}]
  %s4 = inlined_call_operand.vmem [shape: f32[2,32], index: 4, kind: input, shape index: {}]
  %s5 = inlined_call_operand.vmem [shape: f32[32,52], index: 5, kind: input, shape index: {}]
  %s6 = inlined_call_operand.vmem [shape: f32[1,52], index: 6, kind: input, shape index: {}]
  %s7 = inlined_call_operand.vmem [shape: f32[8,8], index: 7, kind: input, shape index: {}]
  %s8 = inlined_call_operand.hbm [shape: f32[2,128], index: 8, kind: output, shape index: {0}]
  %s9 = inlined_call_operand.vmem [shape: f32[2,16,8], index: 9, kind: output, shape index: {1}]
  %10 = xla_tuple %s8, %s9
  %s11 = sld [smem:[#allocation0]]
  $region54: #{tpu_custom_call.1} parent=0
    _
  %s13 = ssub.s32 1, %s11
  %s14 = scalar_select 0, %s13, %s11
  $region1: #{tpu_custom_call.1} parent=0
    #allocation2 [shape = 'u8[28672]{0}', space=vmem, size = 0x7000, scoped, tag = 'input window, operand 2, single buffered']
    #allocation3 [shape = 's32[1]{0}', space=sflag, size = 0x4, scoped, tag = 'scoped memory for tpu_custom_call.1']
    #allocation4 [shape = 's32[1]{0}', space=sflag, size = 0x4, scoped, tag = 'scoped memory for tpu_custom_call.1']
    #allocation5 [shape = 'u8[1024]{0}', space=vmem, size = 0x400, scoped, tag = 'output window, operand 0, single buffered']
    %15 = vsyncpa [#allocation3], 0
    %16 = vsyncpa [#allocation4], 0
    // Predicated region
    $region2: #{tpu_custom_call.1} parent=1 // pred_check
      _
    $region3: #{tpu_custom_call.1} parent=1 // pred_check_branch
      %18 = sbr.rel (0) target = $region5
    $region4: #{tpu_custom_call.1} parent=1 // pred_region
      _
    $region5: #{tpu_custom_call.1} parent=1 // pred_fallthru
      _
    // Predicated region
    $region6: #{tpu_custom_call.1} parent=1 // pred_check
      _
    $region7: #{tpu_custom_call.1} parent=1 // pred_check_branch
      %20 = sbr.rel (0) target = $region9
    $region8: #{tpu_custom_call.1} parent=1 // pred_region
      _
    $region9: #{tpu_custom_call.1} parent=1 // pred_fallthru
      _
    // Predicated region
    $region10: #{tpu_custom_call.1} parent=1 // pred_check
      _
    $region11: #{tpu_custom_call.1} parent=1 // pred_check_branch
      %22 = sbr.rel (0) target = $region13
    $region12: #{tpu_custom_call.1} parent=1 // pred_region
      %s24 = ssub.s32 896, 896
      %25 = vsyncadd [#allocation3], %s24
      %s26 = sshll.u32 [#allocation2], 4
      %s27 = int_to_ptr.vmem [resolvable:$true] %s26
      %32 = dma.hbm_to_vmem [thread:$0]  %s2, 896, %s27, [#allocation3], 128, 128, 8
    $region13: #{tpu_custom_call.1} parent=1 // pred_fallthru
      _
    // Predicated region
    $region14: #{tpu_custom_call.1} parent=1 // pred_check
      _
    $region15: #{tpu_custom_call.1} parent=1 // pred_check_branch
      %34 = sbr.rel (0) target = $region17
    $region16: #{tpu_custom_call.1} parent=1 // pred_region
      _
    $region17: #{tpu_custom_call.1} parent=1 // pred_fallthru
      _
    // Predicated region
    $region18: #{tpu_custom_call.1} parent=1 // pred_check
      _
    $region19: #{tpu_custom_call.1} parent=1 // pred_check_branch
      %36 = sbr.rel (0) target = $region21
    $region20: #{tpu_custom_call.1} parent=1 // pred_region
      _
    $region21: #{tpu_custom_call.1} parent=1 // pred_fallthru
      _
    // Predicated region
    $region22: #{tpu_custom_call.1} parent=1 // pred_check
      _
    $region23: #{tpu_custom_call.1} parent=1 // pred_check_branch
      %38 = sbr.rel (0) target = $region25
    $region24: #{tpu_custom_call.1} parent=1 // pred_region
      _
    $region25: #{tpu_custom_call.1} parent=1 // pred_fallthru
      _
    // Predicated region
    $region26: #{tpu_custom_call.1} parent=1 // pred_check
      _
    $region27: #{tpu_custom_call.1} parent=1 // pred_check_branch
      %40 = sbr.rel (0) target = $region29
    $region28: #{tpu_custom_call.1} parent=1 // pred_region
      _
    $region29: #{tpu_custom_call.1} parent=1 // pred_fallthru
      _
    // Predicated region
    $region30: #{tpu_custom_call.1} parent=1 // pred_check
      _
    $region31: #{tpu_custom_call.1} parent=1 // pred_check_branch
      %42 = sbr.rel (0) target = $region33
    $region32: #{tpu_custom_call.1} parent=1 // pred_region
      _
    $region33: #{tpu_custom_call.1} parent=1 // pred_fallthru
      _
    // Predicated region
    $region34: #{tpu_custom_call.1} parent=1 // pred_check
      _
    $region35: #{tpu_custom_call.1} parent=1 // pred_check_branch
      %44 = sbr.rel (0) target = $region37
    $region36: #{tpu_custom_call.1} parent=1 // pred_region
      %45 = dma.done [#allocation3], 896
    $region37: #{tpu_custom_call.1} parent=1 // pred_fallthru
      _
    %v46 = vld [vmem:[%s0] sm:$0x3]
    %v47 = vld [vmem:[#allocation2] sm:$0xff]
    %v48 = vld [vmem:[#allocation2 + $0x8] sm:$0xff]
    %v49 = vld [vmem:[#allocation2 + $0x10] sm:$0xff]
    %v50 = vld [vmem:[#allocation2 + $0x18] sm:$0xff]
    %v51 = vld [vmem:[#allocation2 + $0x20] sm:$0xff]
    %v52 = vld [vmem:[#allocation2 + $0x28] sm:$0xff]
    %v53 = vld [vmem:[#allocation2 + $0x30] sm:$0x1]
    %vm54 = vcmask 400384
    %v56 = vsel %vm54, %v46, 0
    %vm58 = vcmask 1040384
    %v60 = vsel %vm58, %v53, 0
    %62 = vmatprep.subr.mxu0 0.0
    %63 = vmatpush1.msra.mxu0 %v47
    %64 = vmatprep.subr.mxu0 0.0
    %65 = vmatpush1.msra.mxu0 %v48
    %66 = vmatprep.subr.mxu0 0.0
    %67 = vmatpush1.msra.mxu0 %v49
    %68 = vmatprep.subr.mxu0 0.0
    %69 = vmatpush1.msra.mxu0 %v50
    %70 = vmatprep.subr.mxu0 0.0
    %71 = vmatpush1.msra.mxu0 %v51
    %72 = vmatprep.subr.mxu0 0.0
    %73 = vmatpush1.msra.mxu0 %v52
    %74 = vmatprep.subr.mxu0 0.0
    %75 = vmatpush1.msra.mxu0 %v60
    %76 = vmatprep.subr.mxu0 0.0
    %77 = vmatpush1.msra.mxu0 0.0
    %78 = vmatprep.subr.mxu0 0.0
    %79 = vmatpush1.msra.mxu0 0.0
    %80 = vmatprep.subr.mxu0 0.0
    %81 = vmatpush1.msra.mxu0 0.0
    %82 = vmatprep.subr.mxu0 0.0
    %83 = vmatpush1.msra.mxu0 0.0
    %84 = vmatprep.subr.mxu0 0.0
    %85 = vmatpush1.msra.mxu0 0.0
    %86 = vmatprep.subr.mxu0 0.0
    %87 = vmatpush1.msra.mxu0 0.0
    %88 = vmatprep.subr.mxu0 0.0
    %89 = vmatpush1.msra.mxu0 0.0
    %90 = vmatprep.subr.mxu0 0.0
    %91 = vmatpush1.msra.mxu0 0.0
    %92 = vmatprep.subr.mxu0 0.0
    %93 = vmatpush1.msra.mxu0 0.0
    %94 = vmatprep.subr.mxu0 0.0
    %95 = vmatpush1.msra.mxu0 0.0
    %96 = vmatprep.subr.mxu0 0.0
    %97 = vmatpush1.msra.mxu0 0.0
    %98 = vmatprep.subr.mxu0 0.0
    %99 = vmatpush1.msra.mxu0 0.0
    %100 = vmatprep.subr.mxu0 0.0
    %101 = vmatpush1.msra.mxu0 0.0
    %102 = vmatprep.subr.mxu0 0.0
    %103 = vmatpush1.msra.mxu0 0.0
    %104 = vmatprep.subr.mxu0 0.0
    %105 = vmatpush1.msra.mxu0 0.0
    %106 = vmatprep.subr.mxu0 0.0
    %107 = vmatpush1.msra.mxu0 0.0
    %108 = vmatprep.subr.mxu0 0.0
    %109 = vmatpush1.msra.mxu0 0.0
    %110 = vmatprep.subr.mxu0 0.0
    %111 = vmatpush1.msra.mxu0 0.0
    %112 = vmatprep.subr.mxu0 0.0
    %113 = vmatpush1.msra.mxu0 0.0
    %114 = vmatprep.subr.mxu0 0.0
    %115 = vmatpush1.msra.mxu0 0.0
    %116 = vmatprep.subr.mxu0 0.0
    %117 = vmatpush1.msra.mxu0 0.0
    %118 = vmatprep.subr.mxu0 0.0
    %119 = vmatpush1.msra.mxu0 0.0
    %120 = vmatprep.subr.mxu0 0.0
    %121 = vmatpush1.msra.mxu0 0.0
    %122 = vmatprep.subr.mxu0 0.0
    %123 = vmatpush1.msra.mxu0 0.0
    %124 = vmatprep.subr.mxu0 0.0
    %125 = vmatpush1.msra.mxu0 0.0
    %126 = vmatprep.mubr.f32.mxu0 0.0
    %127 = vmatmul.mubr.f32.gmra.mrb[0].mxu0 %v56
    %v128 = vpop.f32.mrb[0].mxu0
    %v129 = vadd.f32 0.0, %v128
    %v130 = vpop.f32.mrb[0].mxu0
    %131 = vdwg.mxu0
    %v132 = vsub.f32 0.0, %v129
    %v133 = vmul.f32 %v132, 1.442695
    %v134 = vpow.pop %v133
    %v135 = vadd.f32 %v134, 1.0
    %v136 = vrcp.pop %v135
    %v137 = vtanh.pop %v129
    %v138 = vld [vmem:[%s1] sm:$0x3]
    %140 = vrot.lane.b32.xlu0 %v138, 32
    %v141 = vpop.permute.xlu0 %140
    %v143 = vmul.f32 %v136, %v141
    %145 = vrot.lane.b32.xlu0 %v137, 64
    %v146 = vpop.permute.xlu0 %145
    %v148 = vmul.f32 %v136, %v146
    %150 = vrot.lane.b32.xlu0 %v148, 32
    %v151 = vpop.permute.xlu0 %150
    %v153 = vadd.f32 %v143, %v151
    %v154 = vtanh.pop %v153
    %156 = vrot.lane.b32.xlu0 %v154, 64
    %v157 = vpop.permute.xlu0 %156
    %v159 = vmul.f32 %v136, %v157
    %v160 = vld [vmem:[%s3] sm:$0xff]
    %v161 = vld [vmem:[%s3 + $0x8] sm:$0xff]
    %v162 = vld [vmem:[%s3 + $0x10] sm:$0xff]
    %v163 = vld [vmem:[%s3 + $0x18] sm:$0xff]
    %v164 = vlaneseq
    %v165 = vshrl.u32 %v164, 7
    %v166 = vadd.s32 %v165, 8
    %v167 = vlaneseq
    %v168 = vand.u32 %v167, 127
    %v169 = vadd.s32 %v165, 1
    %v170 = vadd.s32 %v166, 1
    %vm171 = vcmp.eq.s32.totalorder %v168, %v169
    %vm172 = vcmp.eq.s32.totalorder %v168, %v170
    %vm173 = vcmp.eq.s32.totalorder %v165, 15
    %vm174 = vcmp.eq.s32.totalorder %v166, 15
    %vm175 = vcmp.eq.s32.totalorder %v168, 0
    %vm176 = vmand %vm173, %vm175
    %vm177 = vmand %vm174, %vm175
    %vm178 = vmor %vm171, %vm176
    %vm179 = vmor %vm172, %vm177
    %v180 = vsel %vm178, 1, 0
    %v181 = vsel %vm179, 1, 0
    %v182 = vcvt.s32.f32 %v180
    %v183 = vcvt.s32.f32 %v181
    %v184 = vsub.s32 %v165, 1
    %v185 = vsub.s32 %v166, 1
    %vm186 = vcmp.eq.s32.totalorder %v168, %v184
    %vm187 = vcmp.eq.s32.totalorder %v168, %v185
    %vm188 = vcmp.eq.s32.totalorder %v165, 0
    %vm189 = vcmp.eq.s32.totalorder %v166, 0
    %vm190 = vcmp.eq.s32.totalorder %v168, 15
    %vm191 = vmand %vm188, %vm190
    %vm192 = vmand %vm189, %vm190
    %vm193 = vmor %vm186, %vm191
    %vm194 = vmor %vm187, %vm192
    %v195 = vsel %vm193, 1, 0
    %v196 = vsel %vm194, 1, 0
    %v197 = vcvt.s32.f32 %v195
    %v198 = vcvt.s32.f32 %v196
    %v199 = vld [vmem:[%s5] sm:$0xff]
    %v200 = vld [vmem:[%s5 + $0x8] sm:$0xff]
    %v201 = vld [vmem:[%s5 + $0x10] sm:$0xff]
    %v202 = vld [vmem:[%s5 + $0x18] sm:$0xff]
    %v203 = vld [vmem:[%s6] sm:$0x1]
    %v205 = vlaneseq
    %v206 = vshrl.u32 %v205, 7
    %v207 = vsub.s32 0, %v206
    %v208 = vrot.slane %v203, %v207
    %211 = vrot.lane.b32.xlu0 %v159, 32
    %v212 = vpop.permute.xlu0 %211
    %vm213 = vcmask 261120
    %v214 = vsel %vm213, %v212, 0
    %216 = vmatprep.subr.mxu0 0.0
    %217 = vmatpush1.msra.mxu0 %v199
    %218 = vmatprep.subr.mxu0 0.0
    %219 = vmatpush1.msra.mxu0 %v200
    %220 = vmatprep.subr.mxu0 0.0
    %221 = vmatpush1.msra.mxu0 %v201
    %222 = vmatprep.subr.mxu0 0.0
    %223 = vmatpush1.msra.mxu0 %v202
    %224 = vmatprep.subr.mxu0 0.0
    %225 = vmatpush1.msra.mxu0 0.0
    %226 = vmatprep.subr.mxu0 0.0
    %227 = vmatpush1.msra.mxu0 0.0
    %228 = vmatprep.subr.mxu0 0.0
    %229 = vmatpush1.msra.mxu0 0.0
    %230 = vmatprep.subr.mxu0 0.0
    %231 = vmatpush1.msra.mxu0 0.0
    %232 = vmatprep.subr.mxu0 0.0
    %233 = vmatpush1.msra.mxu0 0.0
    %234 = vmatprep.subr.mxu0 0.0
    %235 = vmatpush1.msra.mxu0 0.0
    %236 = vmatprep.subr.mxu0 0.0
    %237 = vmatpush1.msra.mxu0 0.0
    %238 = vmatprep.subr.mxu0 0.0
    %239 = vmatpush1.msra.mxu0 0.0
    %240 = vmatprep.subr.mxu0 0.0
    %241 = vmatpush1.msra.mxu0 0.0
    %242 = vmatprep.subr.mxu0 0.0
    %243 = vmatpush1.msra.mxu0 0.0
    %244 = vmatprep.subr.mxu0 0.0
    %245 = vmatpush1.msra.mxu0 0.0
    %246 = vmatprep.subr.mxu0 0.0
    %247 = vmatpush1.msra.mxu0 0.0
    %248 = vmatprep.subr.mxu0 0.0
    %249 = vmatpush1.msra.mxu0 0.0
    %250 = vmatprep.subr.mxu0 0.0
    %251 = vmatpush1.msra.mxu0 0.0
    %252 = vmatprep.subr.mxu0 0.0
    %253 = vmatpush1.msra.mxu0 0.0
    %254 = vmatprep.subr.mxu0 0.0
    %255 = vmatpush1.msra.mxu0 0.0
    %256 = vmatprep.subr.mxu0 0.0
    %257 = vmatpush1.msra.mxu0 0.0
    %258 = vmatprep.subr.mxu0 0.0
    %259 = vmatpush1.msra.mxu0 0.0
    %260 = vmatprep.subr.mxu0 0.0
    %261 = vmatpush1.msra.mxu0 0.0
    %262 = vmatprep.subr.mxu0 0.0
    %263 = vmatpush1.msra.mxu0 0.0
    %264 = vmatprep.subr.mxu0 0.0
    %265 = vmatpush1.msra.mxu0 0.0
    %266 = vmatprep.subr.mxu0 0.0
    %267 = vmatpush1.msra.mxu0 0.0
    %268 = vmatprep.subr.mxu0 0.0
    %269 = vmatpush1.msra.mxu0 0.0
    %270 = vmatprep.subr.mxu0 0.0
    %271 = vmatpush1.msra.mxu0 0.0
    %272 = vmatprep.subr.mxu0 0.0
    %273 = vmatpush1.msra.mxu0 0.0
    %274 = vmatprep.subr.mxu0 0.0
    %275 = vmatpush1.msra.mxu0 0.0
    %276 = vmatprep.subr.mxu0 0.0
    %277 = vmatpush1.msra.mxu0 0.0
    %278 = vmatprep.subr.mxu0 0.0
    %279 = vmatpush1.msra.mxu0 0.0
    %280 = vmatprep.mubr.f32.mxu0 0.0
    %281 = vmatmul.mubr.f32.gmra.mrb[0].mxu0 %v214
    %v282 = vpop.f32.mrb[0].mxu0
    %v283 = vadd.f32 %v208, %v282
    %v284 = vpop.f32.mrb[0].mxu0
    %285 = vdwg.mxu0
    %v286 = vtanh.pop %v283
    %v287 = vmax.f32 %v283, 0.0
    %v288 = vand.u32 2147483647, %v283
    %v289 = vsub.f32 0.0, %v288
    %v290 = vmul.f32 %v289, 1.442695
    %v291 = vpow.pop %v290
    %v292 = vadd.f32 %v291, 1.0
    %v293 = vlog2.pop %v292
    %v294 = vmul.f32 %v293, 0.6931472
    %v295 = vmul.f32 -0.5, %v291
    %v296 = vadd.f32 %v295, 1.0
    %v297 = vmul.f32 %v296, %v291
    %v298 = vand.u32 2147483647, %v291
    %vm299 = vcmp.lt.f32.partialorder %v298, 0.0004427343
    %v300 = vsel %vm299, %v297, %v294
    %v301 = vadd.f32 %v287, %v300
    %v302 = vsub.f32 0.0, %v283
    %v303 = vmul.f32 %v302, 1.442695
    %v304 = vpow.pop %v303
    %v305 = vadd.f32 %v304, 1.0
    %v306 = vrcp.pop %v305
    %vm307 = vcmask 99408
    %v308 = vsel %vm307, %v283, -inf
    %309 = vmax.xlane.f32.xlu0 %v308
    %v310 = vpop.xlane.xlu0 %309
    %v311 = vsub.f32 %v283, %v310
    %v312 = vmul.f32 %v311, 1.442695
    %v313 = vpow.pop %v312
    %315 = vrot.lane.b32.xlu0 %v313, 118
    %v316 = vpop.permute.xlu0 %315
    %vm318 = vcmask 17408
    %v319 = vsel %vm318, %v316, 0.0
    %320 = vadd.xlane.f32.xlu0 %v319
    %v321 = vpop.xlane.xlu0 %320
    %v322 = vrcp.pop %v321
    %v323 = vmul.f32 %v313, %v322
    %v324 = vadd.f32 %v301, 1.0
    %vm325 = vcmask 214208
    %v326 = vsel %vm325, %v283, -inf
    %327 = vmax.xlane.f32.xlu0 %v326
    %v328 = vpop.xlane.xlu0 %327
    %v329 = vsub.f32 %v283, %v328
    %v330 = vmul.f32 %v329, 1.442695
    %v331 = vpow.pop %v330
    %333 = vrot.lane.b32.xlu0 %v331, 104
    %v334 = vpop.permute.xlu0 %333
    %v336 = vsel %vm318, %v334, 0.0
    %337 = vadd.xlane.f32.xlu0 %v336
    %v338 = vpop.xlane.xlu0 %337
    %v339 = vrcp.pop %v338
    %v340 = vmul.f32 %v331, %v339
    %v341 = vld [vmem:[%s4] sm:$0x3]
    %v344 = vunpack.c.l.s4 1966171168
    %v345 = vunpack.c.0.s8 %v344
    %v346 = vlaneseq
    %v347 = vshrl.u32 %v346, 7
    %v348 = vsub.s32 %v345, %v347
    %v349 = vrot.slane %v286, %v348
    %v350 = vcombine.high %v349, %v349
    %v352 = vunpack.c.l.s4 1966171168
    %v353 = vunpack.c.0.s8 %v352
    %v354 = vlaneseq
    %v355 = vshrl.u32 %v354, 7
    %v356 = vsub.s32 %v353, %v355
    %v357 = vrot.slane %v349, %v356
    %v359 = vunpack.c.l.s4 1966171168
    %v360 = vunpack.c.0.s8 %v359
    %v361 = vlaneseq
    %v362 = vshrl.u32 %v361, 7
    %v363 = vsub.s32 %v360, %v362
    %v364 = vrot.slane %v350, %v363
    %v365 = vlaneseq
    %v366 = vshrl.u32 %v365, 7
    %v367 = vsub.s32 0, %v366
    %v368 = vrot.slane %v357, %v367
    %v369 = vlaneseq
    %v370 = vshrl.u32 %v369, 7
    %v371 = vsub.s32 0, %v370
    %v372 = vrot.slane %v364, %v371
    %v375 = vmul.f32 %v368, %v160
    %v376 = vmul.f32 %v368, %v161
    %v377 = vmul.f32 %v372, %v162
    %v378 = vmul.f32 %v372, %v163
    %vm379 = vcmask 64512
    %v380 = vsel %vm379, %v375, 0.0
    %381 = vadd.xlane.f32.xlu0 %v380
    %v382 = vpop.xlane.xlu0 %381
    %v383 = vsel %vm379, %v376, 0.0
    %384 = vadd.xlane.f32.xlu0 %v383
    %v385 = vpop.xlane.xlu0 %384
    %v386 = vsel %vm379, %v377, 0.0
    %387 = vadd.xlane.f32.xlu0 %v386
    %v388 = vpop.xlane.xlu0 %387
    %v389 = vsel %vm379, %v378, 0.0
    %390 = vadd.xlane.f32.xlu0 %v389
    %v391 = vpop.xlane.xlu0 %390
    %v392 = vmul.f32 %v286, %v286
    %vm393 = vcmask 58368
    %v394 = vsel %vm393, %v392, 0.0
    %395 = vadd.xlane.f32.xlu0 %v394
    %v396 = vpop.xlane.xlu0 %395
    %v397 = vrsqrt.pop %v396
    %v398 = vmul.f32 %v396, %v397
    %vm399 = vcmp.eq.f32.partialorder %v396, inf
    %v400 = vsel %vm399, %v396, %v398
    %vm401 = vcmp.eq.f32.partialorder %v396, 0.0
    %v402 = vand.u32 %v396, 2147483648
    %v403 = vsel %vm401, %v402, %v400
    %v404 = vmul.f32 %v160, %v160
    %v405 = vmul.f32 %v161, %v161
    %v406 = vmul.f32 %v162, %v162
    %v407 = vmul.f32 %v163, %v163
    %v408 = vsel %vm379, %v404, 0.0
    %409 = vadd.xlane.f32.xlu0 %v408
    %v410 = vpop.xlane.xlu0 %409
    %v411 = vsel %vm379, %v405, 0.0
    %412 = vadd.xlane.f32.xlu0 %v411
    %v413 = vpop.xlane.xlu0 %412
    %v414 = vsel %vm379, %v406, 0.0
    %415 = vadd.xlane.f32.xlu0 %v414
    %v416 = vpop.xlane.xlu0 %415
    %v417 = vsel %vm379, %v407, 0.0
    %418 = vadd.xlane.f32.xlu0 %v417
    %v419 = vpop.xlane.xlu0 %418
    %v420 = vrsqrt.pop %v410
    %v421 = vmul.f32 %v410, %v420
    %vm422 = vcmp.eq.f32.partialorder %v410, inf
    %v423 = vsel %vm422, %v410, %v421
    %vm424 = vcmp.eq.f32.partialorder %v410, 0.0
    %v425 = vand.u32 %v410, 2147483648
    %v426 = vsel %vm424, %v425, %v423
    %v427 = vrsqrt.pop %v413
    %v428 = vmul.f32 %v413, %v427
    %vm429 = vcmp.eq.f32.partialorder %v413, inf
    %v430 = vsel %vm429, %v413, %v428
    %vm431 = vcmp.eq.f32.partialorder %v413, 0.0
    %v432 = vand.u32 %v413, 2147483648
    %v433 = vsel %vm431, %v432, %v430
    %v434 = vrsqrt.pop %v416
    %v435 = vmul.f32 %v416, %v434
    %vm436 = vcmp.eq.f32.partialorder %v416, inf
    %v437 = vsel %vm436, %v416, %v435
    %vm438 = vcmp.eq.f32.partialorder %v416, 0.0
    %v439 = vand.u32 %v416, 2147483648
    %v440 = vsel %vm438, %v439, %v437
    %v441 = vrsqrt.pop %v419
    %v442 = vmul.f32 %v419, %v441
    %vm443 = vcmp.eq.f32.partialorder %v419, inf
    %v444 = vsel %vm443, %v419, %v442
    %vm445 = vcmp.eq.f32.partialorder %v419, 0.0
    %v446 = vand.u32 %v419, 2147483648
    %v447 = vsel %vm445, %v446, %v444
    %v448 = vmax.f32 %v403, 1e-08
    %v449 = vmax.f32 %v426, 1e-08
    %v450 = vmax.f32 %v433, 1e-08
    %v451 = vmax.f32 %v440, 1e-08
    %v452 = vmax.f32 %v447, 1e-08
    %v457 = vlaneseq
    %v458 = vshrl.u32 %v457, 7
    %v459 = vsub.s32 %v168, %v458
    %v460 = vrot.slane %v449, %v459
    %v461 = vadd.s32 %v168, 4294967288
    %v462 = vlaneseq
    %v463 = vshrl.u32 %v462, 7
    %v464 = vsub.s32 %v461, %v463
    %v465 = vrot.slane %v450, %v464
    %vm466 = vcmask 130112
    %v467 = vsel %vm466, %v465, %v460
    %v468 = vlaneseq
    %v469 = vshrl.u32 %v468, 7
    %v470 = vsub.s32 %v168, %v469
    %v471 = vrot.slane %v451, %v470
    %v472 = vlaneseq
    %v473 = vshrl.u32 %v472, 7
    %v474 = vsub.s32 %v461, %v473
    %v475 = vrot.slane %v452, %v474
    %v476 = vsel %vm466, %v475, %v471
    %vm477 = vcmask 1041409
    %v478 = vsel %vm477, %v476, %v467
    %v480 = vmul.f32 %v448, %v478
    %v481 = vrcp.pop %v480
    %v483 = vlaneseq
    %v484 = vshrl.u32 %v483, 7
    %v485 = vsub.s32 0, %v484
    %v486 = vrot.slane %v481, %v485
    %488 = vbcast.lane.b32.xlu0 %v486, 256
    %v489 = vpop.permute.xlu0 %488
    %s491 = sor.u32 256, 8
    %492 = vbcast.lane.b32.xlu0 %v486, %s491
    %v493 = vpop.permute.xlu0 %492
    %v494 = vlaneseq
    %v495 = vshrl.u32 %v494, 7
    %v496 = vsub.s32 1, %v495
    %v497 = vrot.slane %v481, %v496
    %499 = vbcast.lane.b32.xlu0 %v497, 256
    %v500 = vpop.permute.xlu0 %499
    %s502 = sor.u32 256, 8
    %503 = vbcast.lane.b32.xlu0 %v497, %s502
    %v504 = vpop.permute.xlu0 %503
    %v509 = vmul.f32 %v382, %v489
    %v510 = vmul.f32 %v385, %v493
    %v511 = vmul.f32 %v388, %v500
    %v512 = vmul.f32 %v391, %v504
    %514 = vset.pattern.permute.xlu0 8
    %515 = vperm.xlu0 %514, %v301
    %v516 = vpop.permute.xlu0 %515
    %522 = vset.pattern.permute.xlu0 0
    %523 = vperm.xlu0 %522, %v509
    %v524 = vpop.permute.xlu0 %523
    %525 = vset.pattern.permute.xlu0 0
    %526 = vperm.xlu0 %525, %v510
    %v527 = vpop.permute.xlu0 %526
    %528 = vset.pattern.permute.xlu0 0
    %529 = vperm.xlu0 %528, %v511
    %v530 = vpop.permute.xlu0 %529
    %531 = vset.pattern.permute.xlu0 0
    %532 = vperm.xlu0 %531, %v512
    %v533 = vpop.permute.xlu0 %532
    %v534 = vlaneseq
    %v535 = vshrl.u32 %v534, 7
    %v536 = vsub.s32 %v168, %v535
    %v537 = vrot.slane %v524, %v536
    %v538 = vlaneseq
    %v539 = vshrl.u32 %v538, 7
    %v540 = vsub.s32 %v461, %v539
    %v541 = vrot.slane %v527, %v540
    %v542 = vsel %vm466, %v541, %v537
    %v543 = vlaneseq
    %v544 = vshrl.u32 %v543, 7
    %v545 = vsub.s32 %v168, %v544
    %v546 = vrot.slane %v530, %v545
    %v547 = vlaneseq
    %v548 = vshrl.u32 %v547, 7
    %v549 = vsub.s32 %v461, %v548
    %v550 = vrot.slane %v533, %v549
    %v551 = vsel %vm466, %v550, %v546
    %v552 = vsel %vm477, %v551, %v542
    %v554 = vmul.f32 %v516, %v552
    %vm555 = vcmask 123904
    %v556 = vsel %vm555, %v554, -inf
    %557 = vmax.xlane.f32.xlu0 %v556
    %v558 = vpop.xlane.xlu0 %557
    %v559 = vsub.f32 %v554, %v558
    %v560 = vmul.f32 %v559, 1.442695
    %v561 = vpow.pop %v560
    %v562 = vsel %vm555, %v561, 0.0
    %563 = vadd.xlane.f32.xlu0 %v562
    %v564 = vpop.xlane.xlu0 %563
    %v565 = vrcp.pop %v564
    %v566 = vmul.f32 %v561, %v565
    %568 = vset.pattern.permute.xlu0 9
    %569 = vperm.xlu0 %568, %v306
    %v570 = vpop.permute.xlu0 %569
    %v572 = vmul.f32 %v570, %v566
    %v573 = vsub.f32 1.0, %v306
    %575 = vset.pattern.permute.xlu0 9
    %576 = vperm.xlu0 %575, %v573
    %v577 = vpop.permute.xlu0 %576
    %v579 = vmul.f32 %v577, %v341
    %v580 = vadd.f32 %v572, %v579
    %vm581 = vcmask 130048
    %v583 = vsel %vm581, %v580, 0
    %585 = vmatprep.subr.mxu0 0.0
    %586 = vmatpush1.msra.mxu0 %v182
    %587 = vmatprep.subr.mxu0 0.0
    %588 = vmatpush1.msra.mxu0 %v183
    %589 = vmatprep.subr.mxu0 0.0
    %590 = vmatpush1.msra.mxu0 0.0
    %591 = vmatprep.subr.mxu0 0.0
    %592 = vmatpush1.msra.mxu0 0.0
    %593 = vmatprep.subr.mxu0 0.0
    %594 = vmatpush1.msra.mxu0 0.0
    %595 = vmatprep.subr.mxu0 0.0
    %596 = vmatpush1.msra.mxu0 0.0
    %597 = vmatprep.subr.mxu0 0.0
    %598 = vmatpush1.msra.mxu0 0.0
    %599 = vmatprep.subr.mxu0 0.0
    %600 = vmatpush1.msra.mxu0 0.0
    %601 = vmatprep.subr.mxu0 0.0
    %602 = vmatpush1.msra.mxu0 0.0
    %603 = vmatprep.subr.mxu0 0.0
    %604 = vmatpush1.msra.mxu0 0.0
    %605 = vmatprep.subr.mxu0 0.0
    %606 = vmatpush1.msra.mxu0 0.0
    %607 = vmatprep.subr.mxu0 0.0
    %608 = vmatpush1.msra.mxu0 0.0
    %609 = vmatprep.subr.mxu0 0.0
    %610 = vmatpush1.msra.mxu0 0.0
    %611 = vmatprep.subr.mxu0 0.0
    %612 = vmatpush1.msra.mxu0 0.0
    %613 = vmatprep.subr.mxu0 0.0
    %614 = vmatpush1.msra.mxu0 0.0
    %615 = vmatprep.subr.mxu0 0.0
    %616 = vmatpush1.msra.mxu0 0.0
    %617 = vmatprep.subr.mxu0 0.0
    %618 = vmatpush1.msra.mxu0 0.0
    %619 = vmatprep.subr.mxu0 0.0
    %620 = vmatpush1.msra.mxu0 0.0
    %621 = vmatprep.subr.mxu0 0.0
    %622 = vmatpush1.msra.mxu0 0.0
    %623 = vmatprep.subr.mxu0 0.0
    %624 = vmatpush1.msra.mxu0 0.0
    %625 = vmatprep.subr.mxu0 0.0
    %626 = vmatpush1.msra.mxu0 0.0
    %627 = vmatprep.subr.mxu0 0.0
    %628 = vmatpush1.msra.mxu0 0.0
    %629 = vmatprep.subr.mxu0 0.0
    %630 = vmatpush1.msra.mxu0 0.0
    %631 = vmatprep.subr.mxu0 0.0
    %632 = vmatpush1.msra.mxu0 0.0
    %633 = vmatprep.subr.mxu0 0.0
    %634 = vmatpush1.msra.mxu0 0.0
    %635 = vmatprep.subr.mxu0 0.0
    %636 = vmatpush1.msra.mxu0 0.0
    %637 = vmatprep.subr.mxu0 0.0
    %638 = vmatpush1.msra.mxu0 0.0
    %639 = vmatprep.subr.mxu0 0.0
    %640 = vmatpush1.msra.mxu0 0.0
    %641 = vmatprep.subr.mxu0 0.0
    %642 = vmatpush1.msra.mxu0 0.0
    %643 = vmatprep.subr.mxu0 0.0
    %644 = vmatpush1.msra.mxu0 0.0
    %645 = vmatprep.subr.mxu0 0.0
    %646 = vmatpush1.msra.mxu0 0.0
    %647 = vmatprep.subr.mxu0 0.0
    %648 = vmatpush1.msra.mxu0 0.0
    %649 = vmatprep.mubr.f32.mxu0 0.0
    %650 = vmatmul.mubr.f32.gmra.mrb[0].mxu0 %v583
    %v651 = vpop.f32.mrb[0].mxu0
    %v652 = vadd.f32 0.0, %v651
    %v653 = vpop.f32.mrb[0].mxu0
    %654 = vdwg.mxu0
    %655 = vmatprep.subr.mxu0 0.0
    %656 = vmatpush1.msra.mxu0 %v197
    %657 = vmatprep.subr.mxu0 0.0
    %658 = vmatpush1.msra.mxu0 %v198
    %659 = vmatprep.subr.mxu0 0.0
    %660 = vmatpush1.msra.mxu0 0.0
    %661 = vmatprep.subr.mxu0 0.0
    %662 = vmatpush1.msra.mxu0 0.0
    %663 = vmatprep.subr.mxu0 0.0
    %664 = vmatpush1.msra.mxu0 0.0
    %665 = vmatprep.subr.mxu0 0.0
    %666 = vmatpush1.msra.mxu0 0.0
    %667 = vmatprep.subr.mxu0 0.0
    %668 = vmatpush1.msra.mxu0 0.0
    %669 = vmatprep.subr.mxu0 0.0
    %670 = vmatpush1.msra.mxu0 0.0
    %671 = vmatprep.subr.mxu0 0.0
    %672 = vmatpush1.msra.mxu0 0.0
    %673 = vmatprep.subr.mxu0 0.0
    %674 = vmatpush1.msra.mxu0 0.0
    %675 = vmatprep.subr.mxu0 0.0
    %676 = vmatpush1.msra.mxu0 0.0
    %677 = vmatprep.subr.mxu0 0.0
    %678 = vmatpush1.msra.mxu0 0.0
    %679 = vmatprep.subr.mxu0 0.0
    %680 = vmatpush1.msra.mxu0 0.0
    %681 = vmatprep.subr.mxu0 0.0
    %682 = vmatpush1.msra.mxu0 0.0
    %683 = vmatprep.subr.mxu0 0.0
    %684 = vmatpush1.msra.mxu0 0.0
    %685 = vmatprep.subr.mxu0 0.0
    %686 = vmatpush1.msra.mxu0 0.0
    %687 = vmatprep.subr.mxu0 0.0
    %688 = vmatpush1.msra.mxu0 0.0
    %689 = vmatprep.subr.mxu0 0.0
    %690 = vmatpush1.msra.mxu0 0.0
    %691 = vmatprep.subr.mxu0 0.0
    %692 = vmatpush1.msra.mxu0 0.0
    %693 = vmatprep.subr.mxu0 0.0
    %694 = vmatpush1.msra.mxu0 0.0
    %695 = vmatprep.subr.mxu0 0.0
    %696 = vmatpush1.msra.mxu0 0.0
    %697 = vmatprep.subr.mxu0 0.0
    %698 = vmatpush1.msra.mxu0 0.0
    %699 = vmatprep.subr.mxu0 0.0
    %700 = vmatpush1.msra.mxu0 0.0
    %701 = vmatprep.subr.mxu0 0.0
    %702 = vmatpush1.msra.mxu0 0.0
    %703 = vmatprep.subr.mxu0 0.0
    %704 = vmatpush1.msra.mxu0 0.0
    %705 = vmatprep.subr.mxu0 0.0
    %706 = vmatpush1.msra.mxu0 0.0
    %707 = vmatprep.subr.mxu0 0.0
    %708 = vmatpush1.msra.mxu0 0.0
    %709 = vmatprep.subr.mxu0 0.0
    %710 = vmatpush1.msra.mxu0 0.0
    %711 = vmatprep.subr.mxu0 0.0
    %712 = vmatpush1.msra.mxu0 0.0
    %713 = vmatprep.subr.mxu0 0.0
    %714 = vmatpush1.msra.mxu0 0.0
    %715 = vmatprep.subr.mxu0 0.0
    %716 = vmatpush1.msra.mxu0 0.0
    %717 = vmatprep.subr.mxu0 0.0
    %718 = vmatpush1.msra.mxu0 0.0
    %719 = vmatprep.mubr.f32.mxu0 0.0
    %720 = vmatmul.mubr.f32.gmra.mrb[0].mxu0 %v583
    %v721 = vpop.f32.mrb[0].mxu0
    %v722 = vadd.f32 0.0, %v721
    %v723 = vpop.f32.mrb[0].mxu0
    %724 = vdwg.mxu0
    %726 = vset.pattern.permute.xlu0 10
    %727 = vperm.xlu0 %726, %v323
    %v728 = vpop.permute.xlu0 %727
    %v730 = vmul.f32 %v728, %v652
    %731 = vset.pattern.permute.xlu0 11
    %732 = vperm.xlu0 %731, %v323
    %v733 = vpop.permute.xlu0 %732
    %v735 = vmul.f32 %v733, %v580
    %v736 = vadd.f32 %v730, %v735
    %737 = vset.pattern.permute.xlu0 12
    %738 = vperm.xlu0 %737, %v323
    %v739 = vpop.permute.xlu0 %738
    %v741 = vmul.f32 %v739, %v722
    %v742 = vadd.f32 %v736, %v741
    %744 = vset.pattern.permute.xlu0 13
    %745 = vperm.xlu0 %744, %v324
    %v746 = vpop.permute.xlu0 %745
    %v748 = vpow.f32 %v742, %v746
    %v749 = vsel %vm555, %v748, 0.0
    %750 = vadd.xlane.f32.xlu0 %v749
    %v751 = vpop.xlane.xlu0 %750
    %v752 = vadd.f32 %v751, 1e-16
    %v753 = vrcp.pop %v752
    %v754 = vmul.f32 %v748, %v753
    %v755 = vlaneseq
    %v756 = vshrl.u32 %v755, 7
    %v757 = vsub.s32 0, %v756
    %v758 = vrot.slane %v754, %v757
    %760 = vbcast.lane.b32.xlu0 %v758, 256
    %v761 = vpop.permute.xlu0 %760
    %s763 = sor.u32 256, 8
    %764 = vbcast.lane.b32.xlu0 %v758, %s763
    %v765 = vpop.permute.xlu0 %764
    %v766 = vlaneseq
    %v767 = vshrl.u32 %v766, 7
    %v768 = vsub.s32 1, %v767
    %v769 = vrot.slane %v754, %v768
    %771 = vbcast.lane.b32.xlu0 %v769, 256
    %v772 = vpop.permute.xlu0 %771
    %s774 = sor.u32 256, 8
    %775 = vbcast.lane.b32.xlu0 %v769, %s774
    %v776 = vpop.permute.xlu0 %775
    %v777 = vmul.f32 %v761, %v160
    %v778 = vmul.f32 %v765, %v161
    %v779 = vmul.f32 %v772, %v162
    %v780 = vmul.f32 %v776, %v163
    %v781 = vsel %vm379, %v777, 0.0
    %v782 = vsel %vm379, %v778, 0.0
    %v783 = vadd.f32 %v781, %v782
    %v784 = vrot.slane %v783, 4
    %v785 = vadd.f32 %v783, %v784
    %v786 = vrot.slane %v785, 2
    %v787 = vadd.f32 %v785, %v786
    %v788 = vrot.slane %v787, 1
    %v789 = vadd.f32 %v787, %v788
    %v790 = vsel %vm379, %v779, 0.0
    %v791 = vsel %vm379, %v780, 0.0
    %v792 = vadd.f32 %v790, %v791
    %v793 = vrot.slane %v792, 4
    %v794 = vadd.f32 %v792, %v793
    %v795 = vrot.slane %v794, 2
    %v796 = vadd.f32 %v794, %v795
    %v797 = vrot.slane %v796, 1
    %v798 = vadd.f32 %v796, %v797
    %803 = vrot.lane.b32.xlu0 %v160, 14
    %v804 = vpop.permute.xlu0 %803
    %805 = vrot.lane.b32.xlu0 %v161, 14
    %v806 = vpop.permute.xlu0 %805
    %807 = vrot.lane.b32.xlu0 %v162, 14
    %v808 = vpop.permute.xlu0 %807
    %809 = vrot.lane.b32.xlu0 %v163, 14
    %v810 = vpop.permute.xlu0 %809
    %v815 = vmul.f32 %v368, %v804
    %v816 = vmul.f32 %v368, %v806
    %v817 = vmul.f32 %v372, %v808
    %v818 = vmul.f32 %v372, %v810
    %823 = vrot.lane.b32.xlu0 %v815, 114
    %v824 = vpop.permute.xlu0 %823
    %825 = vrot.lane.b32.xlu0 %v816, 114
    %v826 = vpop.permute.xlu0 %825
    %827 = vrot.lane.b32.xlu0 %v817, 114
    %v828 = vpop.permute.xlu0 %827
    %829 = vrot.lane.b32.xlu0 %v818, 114
    %v830 = vpop.permute.xlu0 %829
    %v835 = vsel %vm379, %v824, 0.0
    %836 = vadd.xlane.f32.xlu0 %v835
    %v837 = vpop.xlane.xlu0 %836
    %v838 = vsel %vm379, %v826, 0.0
    %839 = vadd.xlane.f32.xlu0 %v838
    %v840 = vpop.xlane.xlu0 %839
    %v841 = vsel %vm379, %v828, 0.0
    %842 = vadd.xlane.f32.xlu0 %v841
    %v843 = vpop.xlane.xlu0 %842
    %v844 = vsel %vm379, %v830, 0.0
    %845 = vadd.xlane.f32.xlu0 %v844
    %v846 = vpop.xlane.xlu0 %845
    %848 = vrot.lane.b32.xlu0 %v392, 114
    %v849 = vpop.permute.xlu0 %848
    %v851 = vsel %vm393, %v849, 0.0
    %852 = vadd.xlane.f32.xlu0 %v851
    %v853 = vpop.xlane.xlu0 %852
    %v854 = vrsqrt.pop %v853
    %v855 = vmul.f32 %v853, %v854
    %vm856 = vcmp.eq.f32.partialorder %v853, inf
    %v857 = vsel %vm856, %v853, %v855
    %vm858 = vcmp.eq.f32.partialorder %v853, 0.0
    %v859 = vand.u32 %v853, 2147483648
    %v860 = vsel %vm858, %v859, %v857
    %v861 = vmax.f32 %v860, 1e-08
    %v862 = vmul.f32 %v861, %v478
    %v863 = vrcp.pop %v862
    %v865 = vlaneseq
    %v866 = vshrl.u32 %v865, 7
    %v867 = vsub.s32 0, %v866
    %v868 = vrot.slane %v863, %v867
    %870 = vbcast.lane.b32.xlu0 %v868, 256
    %v871 = vpop.permute.xlu0 %870
    %s873 = sor.u32 256, 8
    %874 = vbcast.lane.b32.xlu0 %v868, %s873
    %v875 = vpop.permute.xlu0 %874
    %v876 = vlaneseq
    %v877 = vshrl.u32 %v876, 7
    %v878 = vsub.s32 1, %v877
    %v879 = vrot.slane %v863, %v878
    %881 = vbcast.lane.b32.xlu0 %v879, 256
    %v882 = vpop.permute.xlu0 %881
    %s884 = sor.u32 256, 8
    %885 = vbcast.lane.b32.xlu0 %v879, %s884
    %v886 = vpop.permute.xlu0 %885
    %v891 = vmul.f32 %v837, %v871
    %v892 = vmul.f32 %v840, %v875
    %v893 = vmul.f32 %v843, %v882
    %v894 = vmul.f32 %v846, %v886
    %895 = vset.pattern.permute.xlu0 22
    %896 = vperm.xlu0 %895, %v301
    %v897 = vpop.permute.xlu0 %896
    %903 = vset.pattern.permute.xlu0 0
    %904 = vperm.xlu0 %903, %v891
    %v905 = vpop.permute.xlu0 %904
    %906 = vset.pattern.permute.xlu0 0
    %907 = vperm.xlu0 %906, %v892
    %v908 = vpop.permute.xlu0 %907
    %909 = vset.pattern.permute.xlu0 0
    %910 = vperm.xlu0 %909, %v893
    %v911 = vpop.permute.xlu0 %910
    %912 = vset.pattern.permute.xlu0 0
    %913 = vperm.xlu0 %912, %v894
    %v914 = vpop.permute.xlu0 %913
    %v915 = vlaneseq
    %v916 = vshrl.u32 %v915, 7
    %v917 = vsub.s32 %v168, %v916
    %v918 = vrot.slane %v905, %v917
    %v919 = vlaneseq
    %v920 = vshrl.u32 %v919, 7
    %v921 = vsub.s32 %v461, %v920
    %v922 = vrot.slane %v908, %v921
    %v923 = vsel %vm466, %v922, %v918
    %v924 = vlaneseq
    %v925 = vshrl.u32 %v924, 7
    %v926 = vsub.s32 %v168, %v925
    %v927 = vrot.slane %v911, %v926
    %v928 = vlaneseq
    %v929 = vshrl.u32 %v928, 7
    %v930 = vsub.s32 %v461, %v929
    %v931 = vrot.slane %v914, %v930
    %v932 = vsel %vm466, %v931, %v927
    %v933 = vsel %vm477, %v932, %v923
    %v935 = vmul.f32 %v897, %v933
    %v936 = vsel %vm555, %v935, -inf
    %937 = vmax.xlane.f32.xlu0 %v936
    %v938 = vpop.xlane.xlu0 %937
    %v939 = vsub.f32 %v935, %v938
    %v940 = vmul.f32 %v939, 1.442695
    %v941 = vpow.pop %v940
    %v942 = vsel %vm555, %v941, 0.0
    %943 = vadd.xlane.f32.xlu0 %v942
    %v944 = vpop.xlane.xlu0 %943
    %v945 = vrcp.pop %v944
    %v946 = vmul.f32 %v941, %v945
    %947 = vset.pattern.permute.xlu0 23
    %948 = vperm.xlu0 %947, %v306
    %v949 = vpop.permute.xlu0 %948
    %v951 = vmul.f32 %v949, %v946
    %952 = vset.pattern.permute.xlu0 23
    %953 = vperm.xlu0 %952, %v573
    %v954 = vpop.permute.xlu0 %953
    %v956 = vmul.f32 %v954, %v341
    %958 = vrot.lane.b32.xlu0 %v956, 112
    %v959 = vpop.permute.xlu0 %958
    %v961 = vadd.f32 %v951, %v959
    %v963 = vsel %vm581, %v961, 0
    %965 = vmatprep.subr.mxu0 0.0
    %966 = vmatpush1.msra.mxu0 %v182
    %967 = vmatprep.subr.mxu0 0.0
    %968 = vmatpush1.msra.mxu0 %v183
    %969 = vmatprep.subr.mxu0 0.0
    %970 = vmatpush1.msra.mxu0 0.0
    %971 = vmatprep.subr.mxu0 0.0
    %972 = vmatpush1.msra.mxu0 0.0
    %973 = vmatprep.subr.mxu0 0.0
    %974 = vmatpush1.msra.mxu0 0.0
    %975 = vmatprep.subr.mxu0 0.0
    %976 = vmatpush1.msra.mxu0 0.0
    %977 = vmatprep.subr.mxu0 0.0
    %978 = vmatpush1.msra.mxu0 0.0
    %979 = vmatprep.subr.mxu0 0.0
    %980 = vmatpush1.msra.mxu0 0.0
    %981 = vmatprep.subr.mxu0 0.0
    %982 = vmatpush1.msra.mxu0 0.0
    %983 = vmatprep.subr.mxu0 0.0
    %984 = vmatpush1.msra.mxu0 0.0
    %985 = vmatprep.subr.mxu0 0.0
    %986 = vmatpush1.msra.mxu0 0.0
    %987 = vmatprep.subr.mxu0 0.0
    %988 = vmatpush1.msra.mxu0 0.0
    %989 = vmatprep.subr.mxu0 0.0
    %990 = vmatpush1.msra.mxu0 0.0
    %991 = vmatprep.subr.mxu0 0.0
    %992 = vmatpush1.msra.mxu0 0.0
    %993 = vmatprep.subr.mxu0 0.0
    %994 = vmatpush1.msra.mxu0 0.0
    %995 = vmatprep.subr.mxu0 0.0
    %996 = vmatpush1.msra.mxu0 0.0
    %997 = vmatprep.subr.mxu0 0.0
    %998 = vmatpush1.msra.mxu0 0.0
    %999 = vmatprep.subr.mxu0 0.0
    %1000 = vmatpush1.msra.mxu0 0.0
    %1001 = vmatprep.subr.mxu0 0.0
    %1002 = vmatpush1.msra.mxu0 0.0
    %1003 = vmatprep.subr.mxu0 0.0
    %1004 = vmatpush1.msra.mxu0 0.0
    %1005 = vmatprep.subr.mxu0 0.0
    %1006 = vmatpush1.msra.mxu0 0.0
    %1007 = vmatprep.subr.mxu0 0.0
    %1008 = vmatpush1.msra.mxu0 0.0
    %1009 = vmatprep.subr.mxu0 0.0
    %1010 = vmatpush1.msra.mxu0 0.0
    %1011 = vmatprep.subr.mxu0 0.0
    %1012 = vmatpush1.msra.mxu0 0.0
    %1013 = vmatprep.subr.mxu0 0.0
    %1014 = vmatpush1.msra.mxu0 0.0
    %1015 = vmatprep.subr.mxu0 0.0
    %1016 = vmatpush1.msra.mxu0 0.0
    %1017 = vmatprep.subr.mxu0 0.0
    %1018 = vmatpush1.msra.mxu0 0.0
    %1019 = vmatprep.subr.mxu0 0.0
    %1020 = vmatpush1.msra.mxu0 0.0
    %1021 = vmatprep.subr.mxu0 0.0
    %1022 = vmatpush1.msra.mxu0 0.0
    %1023 = vmatprep.subr.mxu0 0.0
    %1024 = vmatpush1.msra.mxu0 0.0
    %1025 = vmatprep.subr.mxu0 0.0
    %1026 = vmatpush1.msra.mxu0 0.0
    %1027 = vmatprep.subr.mxu0 0.0
    %1028 = vmatpush1.msra.mxu0 0.0
    %1029 = vmatprep.mubr.f32.mxu0 0.0
    %1030 = vmatmul.mubr.f32.gmra.mrb[0].mxu0 %v963
    %v1031 = vpop.f32.mrb[0].mxu0
    %v1032 = vadd.f32 0.0, %v1031
    %v1033 = vpop.f32.mrb[0].mxu0
    %1034 = vdwg.mxu0
    %1035 = vmatprep.subr.mxu0 0.0
    %1036 = vmatpush1.msra.mxu0 %v197
    %1037 = vmatprep.subr.mxu0 0.0
    %1038 = vmatpush1.msra.mxu0 %v198
    %1039 = vmatprep.subr.mxu0 0.0
    %1040 = vmatpush1.msra.mxu0 0.0
    %1041 = vmatprep.subr.mxu0 0.0
    %1042 = vmatpush1.msra.mxu0 0.0
    %1043 = vmatprep.subr.mxu0 0.0
    %1044 = vmatpush1.msra.mxu0 0.0
    %1045 = vmatprep.subr.mxu0 0.0
    %1046 = vmatpush1.msra.mxu0 0.0
    %1047 = vmatprep.subr.mxu0 0.0
    %1048 = vmatpush1.msra.mxu0 0.0
    %1049 = vmatprep.subr.mxu0 0.0
    %1050 = vmatpush1.msra.mxu0 0.0
    %1051 = vmatprep.subr.mxu0 0.0
    %1052 = vmatpush1.msra.mxu0 0.0
    %1053 = vmatprep.subr.mxu0 0.0
    %1054 = vmatpush1.msra.mxu0 0.0
    %1055 = vmatprep.subr.mxu0 0.0
    %1056 = vmatpush1.msra.mxu0 0.0
    %1057 = vmatprep.subr.mxu0 0.0
    %1058 = vmatpush1.msra.mxu0 0.0
    %1059 = vmatprep.subr.mxu0 0.0
    %1060 = vmatpush1.msra.mxu0 0.0
    %1061 = vmatprep.subr.mxu0 0.0
    %1062 = vmatpush1.msra.mxu0 0.0
    %1063 = vmatprep.subr.mxu0 0.0
    %1064 = vmatpush1.msra.mxu0 0.0
    %1065 = vmatprep.subr.mxu0 0.0
    %1066 = vmatpush1.msra.mxu0 0.0
    %1067 = vmatprep.subr.mxu0 0.0
    %1068 = vmatpush1.msra.mxu0 0.0
    %1069 = vmatprep.subr.mxu0 0.0
    %1070 = vmatpush1.msra.mxu0 0.0
    %1071 = vmatprep.subr.mxu0 0.0
    %1072 = vmatpush1.msra.mxu0 0.0
    %1073 = vmatprep.subr.mxu0 0.0
    %1074 = vmatpush1.msra.mxu0 0.0
    %1075 = vmatprep.subr.mxu0 0.0
    %1076 = vmatpush1.msra.mxu0 0.0
    %1077 = vmatprep.subr.mxu0 0.0
    %1078 = vmatpush1.msra.mxu0 0.0
    %1079 = vmatprep.subr.mxu0 0.0
    %1080 = vmatpush1.msra.mxu0 0.0
    %1081 = vmatprep.subr.mxu0 0.0
    %1082 = vmatpush1.msra.mxu0 0.0
    %1083 = vmatprep.subr.mxu0 0.0
    %1084 = vmatpush1.msra.mxu0 0.0
    %1085 = vmatprep.subr.mxu0 0.0
    %1086 = vmatpush1.msra.mxu0 0.0
    %1087 = vmatprep.subr.mxu0 0.0
    %1088 = vmatpush1.msra.mxu0 0.0
    %1089 = vmatprep.subr.mxu0 0.0
    %1090 = vmatpush1.msra.mxu0 0.0
    %1091 = vmatprep.subr.mxu0 0.0
    %1092 = vmatpush1.msra.mxu0 0.0
    %1093 = vmatprep.subr.mxu0 0.0
    %1094 = vmatpush1.msra.mxu0 0.0
    %1095 = vmatprep.subr.mxu0 0.0
    %1096 = vmatpush1.msra.mxu0 0.0
    %1097 = vmatprep.subr.mxu0 0.0
    %1098 = vmatpush1.msra.mxu0 0.0
    %1099 = vmatprep.mubr.f32.mxu0 0.0
    %1100 = vmatmul.mubr.f32.gmra.mrb[0].mxu0 %v963
    %v1101 = vpop.f32.mrb[0].mxu0
    %v1102 = vadd.f32 0.0, %v1101
    %v1103 = vpop.f32.mrb[0].mxu0
    %1104 = vdwg.mxu0
    %1106 = vset.pattern.permute.xlu0 24
    %1107 = vperm.xlu0 %1106, %v340
    %v1108 = vpop.permute.xlu0 %1107
    %v1110 = vmul.f32 %v1108, %v1032
    %1111 = vset.pattern.permute.xlu0 25
    %1112 = vperm.xlu0 %1111, %v340
    %v1113 = vpop.permute.xlu0 %1112
    %v1115 = vmul.f32 %v1113, %v961
    %v1116 = vadd.f32 %v1110, %v1115
    %1117 = vset.pattern.permute.xlu0 26
    %1118 = vperm.xlu0 %1117, %v340
    %v1119 = vpop.permute.xlu0 %1118
    %v1121 = vmul.f32 %v1119, %v1102
    %v1122 = vadd.f32 %v1116, %v1121
    %1123 = vset.pattern.permute.xlu0 27
    %1124 = vperm.xlu0 %1123, %v324
    %v1125 = vpop.permute.xlu0 %1124
    %v1127 = vpow.f32 %v1122, %v1125
    %v1128 = vsel %vm555, %v1127, 0.0
    %1129 = vadd.xlane.f32.xlu0 %v1128
    %v1130 = vpop.xlane.xlu0 %1129
    %v1131 = vadd.f32 %v1130, 1e-16
    %v1132 = vrcp.pop %v1131
    %v1133 = vmul.f32 %v1127, %v1132
    %v1134 = vlaneseq
    %v1135 = vshrl.u32 %v1134, 7
    %v1136 = vsub.s32 0, %v1135
    %v1137 = vrot.slane %v1133, %v1136
    %1139 = vbcast.lane.b32.xlu0 %v1137, 256
    %v1140 = vpop.permute.xlu0 %1139
    %s1142 = sor.u32 256, 8
    %1143 = vbcast.lane.b32.xlu0 %v1137, %s1142
    %v1144 = vpop.permute.xlu0 %1143
    %v1145 = vlaneseq
    %v1146 = vshrl.u32 %v1145, 7
    %v1147 = vsub.s32 1, %v1146
    %v1148 = vrot.slane %v1133, %v1147
    %1150 = vbcast.lane.b32.xlu0 %v1148, 256
    %v1151 = vpop.permute.xlu0 %1150
    %s1153 = sor.u32 256, 8
    %1154 = vbcast.lane.b32.xlu0 %v1148, %s1153
    %v1155 = vpop.permute.xlu0 %1154
    %v1157 = vunpack.c.l.s4 1966171168
    %v1158 = vunpack.c.0.s8 %v1157
    %v1159 = vlaneseq
    %v1160 = vshrl.u32 %v1159, 7
    %v1161 = vsub.s32 %v1158, %v1160
    %v1162 = vrot.slane %v306, %v1161
    %v1163 = vcombine.high %v1162, %v1162
    %v1165 = vunpack.c.l.s4 1966171168
    %v1166 = vunpack.c.0.s8 %v1165
    %v1167 = vlaneseq
    %v1168 = vshrl.u32 %v1167, 7
    %v1169 = vsub.s32 %v1166, %v1168
    %v1170 = vrot.slane %v1162, %v1169
    %v1172 = vunpack.c.l.s4 1966171168
    %v1173 = vunpack.c.0.s8 %v1172
    %v1174 = vlaneseq
    %v1175 = vshrl.u32 %v1174, 7
    %v1176 = vsub.s32 %v1173, %v1175
    %v1177 = vrot.slane %v1163, %v1176
    %v1178 = vlaneseq
    %v1179 = vshrl.u32 %v1178, 7
    %v1180 = vsub.s32 0, %v1179
    %v1181 = vrot.slane %v1170, %v1180
    %v1182 = vlaneseq
    %v1183 = vshrl.u32 %v1182, 7
    %v1184 = vsub.s32 0, %v1183
    %v1185 = vrot.slane %v1177, %v1184
    %v1188 = vmul.f32 %v1140, %v1181
    %v1189 = vmul.f32 %v1144, %v1181
    %v1190 = vmul.f32 %v1151, %v1185
    %v1191 = vmul.f32 %v1155, %v1185
    %v1192 = vmul.f32 %v1140, %v368
    %v1193 = vmul.f32 %v1144, %v368
    %v1194 = vmul.f32 %v1151, %v372
    %v1195 = vmul.f32 %v1155, %v372
    %v1196 = vsub.f32 1.0, %v1188
    %v1197 = vsub.f32 1.0, %v1189
    %v1198 = vsub.f32 1.0, %v1190
    %v1199 = vsub.f32 1.0, %v1191
    %1204 = vrot.lane.b32.xlu0 %v1196, 92
    %v1205 = vpop.permute.xlu0 %1204
    %1206 = vrot.lane.b32.xlu0 %v1197, 92
    %v1207 = vpop.permute.xlu0 %1206
    %1208 = vrot.lane.b32.xlu0 %v1198, 92
    %v1209 = vpop.permute.xlu0 %1208
    %1210 = vrot.lane.b32.xlu0 %v1199, 92
    %v1211 = vpop.permute.xlu0 %1210
    %v1216 = vmul.f32 %v160, %v1205
    %v1217 = vmul.f32 %v161, %v1207
    %v1218 = vmul.f32 %v162, %v1209
    %v1219 = vmul.f32 %v163, %v1211
    %1224 = vrot.lane.b32.xlu0 %v1192, 100
    %v1225 = vpop.permute.xlu0 %1224
    %1226 = vrot.lane.b32.xlu0 %v1193, 100
    %v1227 = vpop.permute.xlu0 %1226
    %1228 = vrot.lane.b32.xlu0 %v1194, 100
    %v1229 = vpop.permute.xlu0 %1228
    %1230 = vrot.lane.b32.xlu0 %v1195, 100
    %v1231 = vpop.permute.xlu0 %1230
    %v1236 = vadd.f32 %v1216, %v1225
    %v1237 = vadd.f32 %v1217, %v1227
    %v1238 = vadd.f32 %v1218, %v1229
    %v1239 = vadd.f32 %v1219, %v1231
    %1240 = vst.msk [vmem:[%s9] sm:$0xff] %vm379, %v1236
    %1241 = vst.msk [vmem:[%s9 + $0x8] sm:$0xff] %vm379, %v1237
    %1242 = vst.msk [vmem:[%s9 + $0x10] sm:$0xff] %vm379, %v1238
    %1243 = vst.msk [vmem:[%s9 + $0x18] sm:$0xff] %vm379, %v1239
    %v1244 = vld [vmem:[%s7] sm:$0xff]
    %v1247 = vsel %vm477, %v798, %v789
    %v1248 = vsel %vm379, %v1247, 0
    %1250 = vmatprep.subr.mxu0 0.0
    %1251 = vmatpush1.msra.mxu0 %v1244
    %1252 = vmatprep.subr.mxu0 0.0
    %1253 = vmatpush1.msra.mxu0 0.0
    %1254 = vmatprep.subr.mxu0 0.0
    %1255 = vmatpush1.msra.mxu0 0.0
    %1256 = vmatprep.subr.mxu0 0.0
    %1257 = vmatpush1.msra.mxu0 0.0
    %1258 = vmatprep.subr.mxu0 0.0
    %1259 = vmatpush1.msra.mxu0 0.0
    %1260 = vmatprep.subr.mxu0 0.0
    %1261 = vmatpush1.msra.mxu0 0.0
    %1262 = vmatprep.subr.mxu0 0.0
    %1263 = vmatpush1.msra.mxu0 0.0
    %1264 = vmatprep.subr.mxu0 0.0
    %1265 = vmatpush1.msra.mxu0 0.0
    %1266 = vmatprep.subr.mxu0 0.0
    %1267 = vmatpush1.msra.mxu0 0.0
    %1268 = vmatprep.subr.mxu0 0.0
    %1269 = vmatpush1.msra.mxu0 0.0
    %1270 = vmatprep.subr.mxu0 0.0
    %1271 = vmatpush1.msra.mxu0 0.0
    %1272 = vmatprep.subr.mxu0 0.0
    %1273 = vmatpush1.msra.mxu0 0.0
    %1274 = vmatprep.subr.mxu0 0.0
    %1275 = vmatpush1.msra.mxu0 0.0
    %1276 = vmatprep.subr.mxu0 0.0
    %1277 = vmatpush1.msra.mxu0 0.0
    %1278 = vmatprep.subr.mxu0 0.0
    %1279 = vmatpush1.msra.mxu0 0.0
    %1280 = vmatprep.subr.mxu0 0.0
    %1281 = vmatpush1.msra.mxu0 0.0
    %1282 = vmatprep.subr.mxu0 0.0
    %1283 = vmatpush1.msra.mxu0 0.0
    %1284 = vmatprep.subr.mxu0 0.0
    %1285 = vmatpush1.msra.mxu0 0.0
    %1286 = vmatprep.subr.mxu0 0.0
    %1287 = vmatpush1.msra.mxu0 0.0
    %1288 = vmatprep.subr.mxu0 0.0
    %1289 = vmatpush1.msra.mxu0 0.0
    %1290 = vmatprep.subr.mxu0 0.0
    %1291 = vmatpush1.msra.mxu0 0.0
    %1292 = vmatprep.subr.mxu0 0.0
    %1293 = vmatpush1.msra.mxu0 0.0
    %1294 = vmatprep.subr.mxu0 0.0
    %1295 = vmatpush1.msra.mxu0 0.0
    %1296 = vmatprep.subr.mxu0 0.0
    %1297 = vmatpush1.msra.mxu0 0.0
    %1298 = vmatprep.subr.mxu0 0.0
    %1299 = vmatpush1.msra.mxu0 0.0
    %1300 = vmatprep.subr.mxu0 0.0
    %1301 = vmatpush1.msra.mxu0 0.0
    %1302 = vmatprep.subr.mxu0 0.0
    %1303 = vmatpush1.msra.mxu0 0.0
    %1304 = vmatprep.subr.mxu0 0.0
    %1305 = vmatpush1.msra.mxu0 0.0
    %1306 = vmatprep.subr.mxu0 0.0
    %1307 = vmatpush1.msra.mxu0 0.0
    %1308 = vmatprep.subr.mxu0 0.0
    %1309 = vmatpush1.msra.mxu0 0.0
    %1310 = vmatprep.subr.mxu0 0.0
    %1311 = vmatpush1.msra.mxu0 0.0
    %1312 = vmatprep.subr.mxu0 0.0
    %1313 = vmatpush1.msra.mxu0 0.0
    %1314 = vmatprep.mubr.f32.mxu0 0.0
    %1315 = vmatmul.mubr.f32.gmra.mrb[0].mxu0 %v1248
    %v1316 = vpop.f32.mrb[0].mxu0
    %v1317 = vadd.f32 0.0, %v1316
    %v1318 = vpop.f32.mrb[0].mxu0
    %1319 = vdwg.mxu0
    %1321 = vrot.lane.b32.xlu0 %v1317, 44
    %v1322 = vpop.permute.xlu0 %1321
    %v1324 = vadd.f32 %v283, %v1322
    %v1325 = vsub.f32 0.0, %v1324
    %v1326 = vmul.f32 %v1325, 1.442695
    %v1327 = vpow.pop %v1326
    %v1328 = vadd.f32 %v1327, 1.0
    %v1329 = vrcp.pop %v1328
    %1331 = vrot.lane.b32.xlu0 %v1329, 84
    %v1332 = vpop.permute.xlu0 %1331
    %1334 = vst.msk [vmem:[#allocation5] sm:$0x3] %vm393, %v1332
    %1335 = vrot.lane.b32.xlu0 %v1247, 8
    %v1336 = vpop.permute.xlu0 %1335
    %vm1338 = vcmask 123968
    %1339 = vst.msk [vmem:[#allocation5] sm:$0x3] %vm1338, %v1336
    %1340 = vrot.lane.b32.xlu0 %v159, 48
    %v1341 = vpop.permute.xlu0 %1340
    %vm1343 = vcmask 386176
    %1344 = vst.msk [vmem:[#allocation5] sm:$0x3] %vm1343, %v1341
    %1346 = vrot.lane.b32.xlu0 %v153, 16
    %v1347 = vpop.permute.xlu0 %1346
    %vm1349 = vcmask 648576
    %1350 = vst.msk [vmem:[#allocation5] sm:$0x3] %vm1349, %v1347
    %1352 = vrot.lane.b32.xlu0 %v754, 80
    %v1353 = vpop.permute.xlu0 %1352
    %vm1355 = vcmask 779904
    %1356 = vst.msk [vmem:[#allocation5] sm:$0x3] %vm1355, %v1353
    %1358 = vrot.lane.b32.xlu0 %v1133, 96
    %v1359 = vpop.permute.xlu0 %1358
    %vm1361 = vcmask 911104
    %1362 = vst.msk [vmem:[#allocation5] sm:$0x3] %vm1361, %v1359
    %vm1363 = vcmask 1042304
    %1364 = vst.msk [vmem:[#allocation5] sm:$0x3] %vm1363, 0.0
    // Predicated region
    $region38: #{tpu_custom_call.1} parent=1 // pred_check
      _
    $region39: #{tpu_custom_call.1} parent=1 // pred_check_branch
      %1366 = sbr.rel (0) target = $region41
    $region40: #{tpu_custom_call.1} parent=1 // pred_region
      %s1368 = ssub.s32 32, 32
      %1369 = vsyncadd [#allocation4], %s1368
      %s1371 = sshll.u32 [#allocation5], 4
      %s1372 = int_to_ptr.vmem [resolvable:$true] %s1371
      %1374 = dma.vmem_to_hbm [thread:$0]  %s1372, 32, %s8, [#allocation4]
    $region41: #{tpu_custom_call.1} parent=1 // pred_fallthru
      _
    // Predicated region
    $region42: #{tpu_custom_call.1} parent=1 // pred_check
      _
    $region43: #{tpu_custom_call.1} parent=1 // pred_check_branch
      %1376 = sbr.rel (0) target = $region45
    $region44: #{tpu_custom_call.1} parent=1 // pred_region
      _
    $region45: #{tpu_custom_call.1} parent=1 // pred_fallthru
      _
    // Predicated region
    $region46: #{tpu_custom_call.1} parent=1 // pred_check
      _
    $region47: #{tpu_custom_call.1} parent=1 // pred_check_branch
      %1378 = sbr.rel (0) target = $region49
    $region48: #{tpu_custom_call.1} parent=1 // pred_region
      %1379 = dma.done [#allocation4], 32
    $region49: #{tpu_custom_call.1} parent=1 // pred_fallthru
      _
    // Predicated region
    $region50: #{tpu_custom_call.1} parent=1 // pred_check
      _
    $region51: #{tpu_custom_call.1} parent=1 // pred_check_branch
      %1381 = sbr.rel (0) target = $region53
    $region52: #{tpu_custom_call.1} parent=1 // pred_region
      _
    $region53: #{tpu_custom_call.1} parent=1 // pred_fallthru
      _
    %1382 = vsyncpa [#allocation3], 1
    %1383 = vsyncpa [#allocation4], 1

</llo_original>
